<compile_context>
chip_gen: v5e
topology: v5e:2x2
jax: 0.10.0
libtpu: 0.0.40
codegen_flags: <defaults>
</compile_context>

<pallas_src>
import jax
import jax.numpy as jnp
from jax import lax
from jax.experimental import pallas as pl
from jax.experimental.pallas import tpu as pltpu


def _round_up(x, m):
    return ((x + m - 1) // m) * m


def _haloed_row_tiles(x_nhwc, tile_h, cp):
    """(N,H,W,C) -> (N, n_tiles, (tile_h+3)*(W+2), Cp), zero-padded + haloed.

    Flattened-row layout: local output row r' = ly*(W+2) + x'; the (ky,kx) conv tap of
    output pixel (ly, x') lives at local input row r' + ky*(W+2) + kx of the tile.
    """
    n, h, w, c = x_nhwc.shape
    n_tiles = -(-h // tile_h)
    hp = n_tiles * tile_h
    # 1 zero row on top (conv pad), (hp-h)+2 zero rows at the bottom (conv pad +
    # flattened-tap overrun for the garbage border columns), 1 zero col left/right,
    # channels zero-padded to a lane multiple.
    xpad = jnp.pad(x_nhwc, ((0, 0), (1, hp - h + 2), (1, 1), (0, cp - c)))
    tiles = [xpad[:, t * tile_h: t * tile_h + tile_h + 3] for t in range(n_tiles)]
    xt = jnp.stack(tiles, axis=1)            # (N, n_tiles, tile_h+3, W+2, Cp)
    return xt.reshape(n, n_tiles, (tile_h + 3) * (w + 2), cp)


def self_attention_pallas(x_nchw, w_conv_hwio, w_attn_hwio, *, tile_h=8):
    n, cin, h, w = x_nchw.shape
    kh, kw, wcin, cout = w_conv_hwio.shape
    assert (kh, kw, wcin) == (3, 3, cin)

    cp = _round_up(cin, 128)
    coutp = _round_up(cout, 128)
    wp2 = w + 2
    n_tiles = -(-h // tile_h)
    lt = (tile_h + 3) * wp2            # haloed input rows per tile
    tw = tile_h * wp2                  # output rows per tile (2 discarded cols per row)

    x_nhwc = jnp.transpose(x_nchw, (0, 2, 3, 1)).astype(jnp.float32)
    xt = _haloed_row_tiles(x_nhwc, tile_h, cp).astype(jnp.bfloat16)

    # Per-tap weights, feature & attention convs fused along the output axis:
    # HWIO (3,3,Cin,Cout) -> (9, Cp, 2*Coutp), zero-padded to lane multiples.
    def pack(wk):
        return jnp.zeros((9, cp, coutp), jnp.float32).at[:, :cin, :cout].set(
            wk.astype(jnp.float32).reshape(9, cin, cout))

    w_all = jnp.concatenate([pack(w_conv_hwio), pack(w_attn_hwio)],
                            axis=-1).astype(jnp.bfloat16)      # (9, Cp, 2*Coutp)

    def kernel(xt_ref, w_ref, o_ref):
        acc = jnp.zeros((tw, 2 * coutp), jnp.float32)
        for ky in range(3):
            for kx in range(3):
                tap = xt_ref[pl.ds(ky * wp2 + kx, tw), :]        # (tw, Cp) bf16
                acc = acc + jnp.dot(tap, w_ref[ky * 3 + kx],
                                    preferred_element_type=jnp.float32)
        feats = acc[:, :coutp]                                   # f32
        gate = pl.reciprocal(1.0 + jnp.exp(-acc[:, coutp:]), approx=True)  # sigmoid
        o_ref[...] = (feats * gate).astype(o_ref.dtype)

    zf = pl.pallas_call(
        kernel,
        out_shape=jax.ShapeDtypeStruct((n, n_tiles, tw, coutp), jnp.float32),
        grid=(n, n_tiles),
        in_specs=[
            pl.BlockSpec((None, None, lt, cp), lambda b, t: (b, t, 0, 0)),
            pl.BlockSpec((9, cp, 2 * coutp), lambda b, t: (0, 0, 0)),  # resident weights
        ],
        out_specs=pl.BlockSpec((None, None, tw, coutp), lambda b, t: (b, t, 0, 0)),
        compiler_params=pltpu.CompilerParams(
            dimension_semantics=("parallel", "parallel"),
            vmem_limit_bytes=32 * 1024 * 1024),
    )(xt, w_all)

    # (N, n_tiles, tile_h*(W+2), Coutp) -> (N, Hp, W+2, Coutp) -> crop -> NCHW
    out = zf.reshape(n, n_tiles * tile_h, wp2, coutp)[:, :h, :w, :cout]
    return jnp.transpose(out, (0, 3, 1, 2))


# --------------------------- pure-JAX reference --------------------------------

def self_attention_reference(x_nchw, w_conv_hwio, w_attn_hwio):
    x = jnp.transpose(x_nchw, (0, 2, 3, 1)).astype(jnp.float32)
    dn = ('NHWC', 'HWIO', 'NHWC')
    feats = lax.conv_general_dilated(x, w_conv_hwio, (1, 1), [(1, 1), (1, 1)],
                                     dimension_numbers=dn)
    logits = lax.conv_general_dilated(x, w_attn_hwio, (1, 1), [(1, 1), (1, 1)],
                                      dimension_numbers=dn)
    out = feats * jax.nn.sigmoid(logits)
    return jnp.transpose(out, (0, 3, 1, 2))


# ----------------------------------- main ---------------------------------------

if __name__ == "__main__":
    N, Cin, Cout, H, W = 2, 4, 16, 16, 16
    key = jax.random.PRNGKey(0)
    kx, kc, ka = jax.random.split(key, 3)
    x_nchw = jax.random.normal(kx, (N, Cin, H, W), jnp.float32)
    w_conv = jax.random.normal(kc, (3, 3, Cin, Cout), jnp.float32) * 0.1
    # The PyTorch module zero-inits the attention conv (sigmoid -> 0.5 everywhere);
    # that is an init-time detail — we use random weights here so the gating path
    # is actually exercised by the correctness check.
    w_attn = jax.random.normal(ka, (3, 3, Cin, Cout), jnp.float32) * 0.1

    out = jax.block_until_ready(self_attention_pallas(x_nchw, w_conv, w_attn, tile_h=8))
    assert out.shape == (N, Cout, H, W), out.shape

    ref = self_attention_reference(x_nchw, w_conv, w_attn)
    max_err = float(jnp.max(jnp.abs(out - ref)))
    # bf16 MXU operands with f32 accumulation -> loose-ish tolerance.
    assert max_err < 5e-2, f"max abs error too large: {max_err}"

    print("KERNEL_OK")
</pallas_src>

<mosaic_0001>
module attributes {stable_mosaic.version = 11 : i64} {
  func.func @kernel(%arg0: i32, %arg1: i32, %arg2: memref<1x1x198x128xbf16, #tpu.memory_space<vmem>>, %arg3: memref<9x128x256xbf16, #tpu.memory_space<vmem>>, %arg4: memref<1x1x144x128xf32, #tpu.memory_space<vmem>>) attributes {dimension_semantics = [#tpu.dimension_semantics<parallel>, #tpu.dimension_semantics<parallel>], iteration_bounds = array<i64: 2, 2>, scalar_prefetch = 0 : i64, scratch_operands = 0 : i64, tpu.core_type = #tpu.core_type<tc>, window_params = [{transform_indices = @transform_0, window_bounds = array<i64: 1, 1, 198, 128>}, {pipeline_mode = #tpu.pipeline_mode<synchronous>, transform_indices = @transform_1, window_bounds = array<i64: 9, 128, 256>}, {transform_indices = @transform_2, window_bounds = array<i64: 1, 1, 144, 128>}]} {
    %cst = arith.constant 0.000000e+00 : f32
    %0 = vector.broadcast %cst : f32 to vector<144x256xf32>
    %c0 = arith.constant 0 : index
    %c0_0 = arith.constant 0 : index
    %c0_1 = arith.constant 0 : index
    %c0_2 = arith.constant 0 : index
    %1 = vector.load %arg2[%c0, %c0_0, %c0_1, %c0_2] : memref<1x1x198x128xbf16, #tpu.memory_space<vmem>>, vector<1x1x144x128xbf16>
    %2 = vector.shape_cast %1 : vector<1x1x144x128xbf16> to vector<144x128xbf16>
    %c0_3 = arith.constant 0 : index
    %c0_4 = arith.constant 0 : index
    %c0_5 = arith.constant 0 : index
    %3 = vector.load %arg3[%c0_3, %c0_4, %c0_5] : memref<9x128x256xbf16, #tpu.memory_space<vmem>>, vector<1x128x256xbf16>
    %4 = vector.shape_cast %3 : vector<1x128x256xbf16> to vector<128x256xbf16>
    %cst_6 = arith.constant dense<0.000000e+00> : vector<144x256xf32>
    %5 = tpu.matmul %2, %4, %cst_6 {dimension_numbers = #tpu.dot_dimension_numbers<[1], [0], [0], [1], [0, 0, 1, 1], [], []>} : vector<144x128xbf16>, vector<128x256xbf16>, vector<144x256xf32> -> vector<144x256xf32>
    %6 = arith.addf %0, %5 : vector<144x256xf32>
    %c0_7 = arith.constant 0 : index
    %c0_8 = arith.constant 0 : index
    %c1 = arith.constant 1 : index
    %c0_9 = arith.constant 0 : index
    %7 = vector.load %arg2[%c0_7, %c0_8, %c1, %c0_9] : memref<1x1x198x128xbf16, #tpu.memory_space<vmem>>, vector<1x1x144x128xbf16>
    %8 = vector.shape_cast %7 : vector<1x1x144x128xbf16> to vector<144x128xbf16>
    %c1_10 = arith.constant 1 : index
    %c0_11 = arith.constant 0 : index
    %c0_12 = arith.constant 0 : index
    %9 = vector.load %arg3[%c1_10, %c0_11, %c0_12] : memref<9x128x256xbf16, #tpu.memory_space<vmem>>, vector<1x128x256xbf16>
    %10 = vector.shape_cast %9 : vector<1x128x256xbf16> to vector<128x256xbf16>
    %cst_13 = arith.constant dense<0.000000e+00> : vector<144x256xf32>
    %11 = tpu.matmul %8, %10, %cst_13 {dimension_numbers = #tpu.dot_dimension_numbers<[1], [0], [0], [1], [0, 0, 1, 1], [], []>} : vector<144x128xbf16>, vector<128x256xbf16>, vector<144x256xf32> -> vector<144x256xf32>
    %12 = arith.addf %6, %11 : vector<144x256xf32>
    %c0_14 = arith.constant 0 : index
    %c0_15 = arith.constant 0 : index
    %c2 = arith.constant 2 : index
    %c0_16 = arith.constant 0 : index
    %13 = vector.load %arg2[%c0_14, %c0_15, %c2, %c0_16] : memref<1x1x198x128xbf16, #tpu.memory_space<vmem>>, vector<1x1x144x128xbf16>
    %14 = vector.shape_cast %13 : vector<1x1x144x128xbf16> to vector<144x128xbf16>
    %c2_17 = arith.constant 2 : index
    %c0_18 = arith.constant 0 : index
    %c0_19 = arith.constant 0 : index
    %15 = vector.load %arg3[%c2_17, %c0_18, %c0_19] : memref<9x128x256xbf16, #tpu.memory_space<vmem>>, vector<1x128x256xbf16>
    %16 = vector.shape_cast %15 : vector<1x128x256xbf16> to vector<128x256xbf16>
    %cst_20 = arith.constant dense<0.000000e+00> : vector<144x256xf32>
    %17 = tpu.matmul %14, %16, %cst_20 {dimension_numbers = #tpu.dot_dimension_numbers<[1], [0], [0], [1], [0, 0, 1, 1], [], []>} : vector<144x128xbf16>, vector<128x256xbf16>, vector<144x256xf32> -> vector<144x256xf32>
    %18 = arith.addf %12, %17 : vector<144x256xf32>
    %c0_21 = arith.constant 0 : index
    %c0_22 = arith.constant 0 : index
    %c18 = arith.constant 18 : index
    %c0_23 = arith.constant 0 : index
    %19 = vector.load %arg2[%c0_21, %c0_22, %c18, %c0_23] : memref<1x1x198x128xbf16, #tpu.memory_space<vmem>>, vector<1x1x144x128xbf16>
    %20 = vector.shape_cast %19 : vector<1x1x144x128xbf16> to vector<144x128xbf16>
    %c3 = arith.constant 3 : index
    %c0_24 = arith.constant 0 : index
    %c0_25 = arith.constant 0 : index
    %21 = vector.load %arg3[%c3, %c0_24, %c0_25] : memref<9x128x256xbf16, #tpu.memory_space<vmem>>, vector<1x128x256xbf16>
    %22 = vector.shape_cast %21 : vector<1x128x256xbf16> to vector<128x256xbf16>
    %cst_26 = arith.constant dense<0.000000e+00> : vector<144x256xf32>
    %23 = tpu.matmul %20, %22, %cst_26 {dimension_numbers = #tpu.dot_dimension_numbers<[1], [0], [0], [1], [0, 0, 1, 1], [], []>} : vector<144x128xbf16>, vector<128x256xbf16>, vector<144x256xf32> -> vector<144x256xf32>
    %24 = arith.addf %18, %23 : vector<144x256xf32>
    %c0_27 = arith.constant 0 : index
    %c0_28 = arith.constant 0 : index
    %c19 = arith.constant 19 : index
    %c0_29 = arith.constant 0 : index
    %25 = vector.load %arg2[%c0_27, %c0_28, %c19, %c0_29] : memref<1x1x198x128xbf16, #tpu.memory_space<vmem>>, vector<1x1x144x128xbf16>
    %26 = vector.shape_cast %25 : vector<1x1x144x128xbf16> to vector<144x128xbf16>
    %c4 = arith.constant 4 : index
    %c0_30 = arith.constant 0 : index
    %c0_31 = arith.constant 0 : index
    %27 = vector.load %arg3[%c4, %c0_30, %c0_31] : memref<9x128x256xbf16, #tpu.memory_space<vmem>>, vector<1x128x256xbf16>
    %28 = vector.shape_cast %27 : vector<1x128x256xbf16> to vector<128x256xbf16>
    %cst_32 = arith.constant dense<0.000000e+00> : vector<144x256xf32>
    %29 = tpu.matmul %26, %28, %cst_32 {dimension_numbers = #tpu.dot_dimension_numbers<[1], [0], [0], [1], [0, 0, 1, 1], [], []>} : vector<144x128xbf16>, vector<128x256xbf16>, vector<144x256xf32> -> vector<144x256xf32>
    %30 = arith.addf %24, %29 : vector<144x256xf32>
    %c0_33 = arith.constant 0 : index
    %c0_34 = arith.constant 0 : index
    %c20 = arith.constant 20 : index
    %c0_35 = arith.constant 0 : index
    %31 = vector.load %arg2[%c0_33, %c0_34, %c20, %c0_35] : memref<1x1x198x128xbf16, #tpu.memory_space<vmem>>, vector<1x1x144x128xbf16>
    %32 = vector.shape_cast %31 : vector<1x1x144x128xbf16> to vector<144x128xbf16>
    %c5 = arith.constant 5 : index
    %c0_36 = arith.constant 0 : index
    %c0_37 = arith.constant 0 : index
    %33 = vector.load %arg3[%c5, %c0_36, %c0_37] : memref<9x128x256xbf16, #tpu.memory_space<vmem>>, vector<1x128x256xbf16>
    %34 = vector.shape_cast %33 : vector<1x128x256xbf16> to vector<128x256xbf16>
    %cst_38 = arith.constant dense<0.000000e+00> : vector<144x256xf32>
    %35 = tpu.matmul %32, %34, %cst_38 {dimension_numbers = #tpu.dot_dimension_numbers<[1], [0], [0], [1], [0, 0, 1, 1], [], []>} : vector<144x128xbf16>, vector<128x256xbf16>, vector<144x256xf32> -> vector<144x256xf32>
    %36 = arith.addf %30, %35 : vector<144x256xf32>
    %c0_39 = arith.constant 0 : index
    %c0_40 = arith.constant 0 : index
    %c36 = arith.constant 36 : index
    %c0_41 = arith.constant 0 : index
    %37 = vector.load %arg2[%c0_39, %c0_40, %c36, %c0_41] : memref<1x1x198x128xbf16, #tpu.memory_space<vmem>>, vector<1x1x144x128xbf16>
    %38 = vector.shape_cast %37 : vector<1x1x144x128xbf16> to vector<144x128xbf16>
    %c6 = arith.constant 6 : index
    %c0_42 = arith.constant 0 : index
    %c0_43 = arith.constant 0 : index
    %39 = vector.load %arg3[%c6, %c0_42, %c0_43] : memref<9x128x256xbf16, #tpu.memory_space<vmem>>, vector<1x128x256xbf16>
    %40 = vector.shape_cast %39 : vector<1x128x256xbf16> to vector<128x256xbf16>
    %cst_44 = arith.constant dense<0.000000e+00> : vector<144x256xf32>
    %41 = tpu.matmul %38, %40, %cst_44 {dimension_numbers = #tpu.dot_dimension_numbers<[1], [0], [0], [1], [0, 0, 1, 1], [], []>} : vector<144x128xbf16>, vector<128x256xbf16>, vector<144x256xf32> -> vector<144x256xf32>
    %42 = arith.addf %36, %41 : vector<144x256xf32>
    %c0_45 = arith.constant 0 : index
    %c0_46 = arith.constant 0 : index
    %c37 = arith.constant 37 : index
    %c0_47 = arith.constant 0 : index
    %43 = vector.load %arg2[%c0_45, %c0_46, %c37, %c0_47] : memref<1x1x198x128xbf16, #tpu.memory_space<vmem>>, vector<1x1x144x128xbf16>
    %44 = vector.shape_cast %43 : vector<1x1x144x128xbf16> to vector<144x128xbf16>
    %c7 = arith.constant 7 : index
    %c0_48 = arith.constant 0 : index
    %c0_49 = arith.constant 0 : index
    %45 = vector.load %arg3[%c7, %c0_48, %c0_49] : memref<9x128x256xbf16, #tpu.memory_space<vmem>>, vector<1x128x256xbf16>
    %46 = vector.shape_cast %45 : vector<1x128x256xbf16> to vector<128x256xbf16>
    %cst_50 = arith.constant dense<0.000000e+00> : vector<144x256xf32>
    %47 = tpu.matmul %44, %46, %cst_50 {dimension_numbers = #tpu.dot_dimension_numbers<[1], [0], [0], [1], [0, 0, 1, 1], [], []>} : vector<144x128xbf16>, vector<128x256xbf16>, vector<144x256xf32> -> vector<144x256xf32>
    %48 = arith.addf %42, %47 : vector<144x256xf32>
    %c0_51 = arith.constant 0 : index
    %c0_52 = arith.constant 0 : index
    %c38 = arith.constant 38 : index
    %c0_53 = arith.constant 0 : index
    %49 = vector.load %arg2[%c0_51, %c0_52, %c38, %c0_53] : memref<1x1x198x128xbf16, #tpu.memory_space<vmem>>, vector<1x1x144x128xbf16>
    %50 = vector.shape_cast %49 : vector<1x1x144x128xbf16> to vector<144x128xbf16>
    %c8 = arith.constant 8 : index
    %c0_54 = arith.constant 0 : index
    %c0_55 = arith.constant 0 : index
    %51 = vector.load %arg3[%c8, %c0_54, %c0_55] : memref<9x128x256xbf16, #tpu.memory_space<vmem>>, vector<1x128x256xbf16>
    %52 = vector.shape_cast %51 : vector<1x128x256xbf16> to vector<128x256xbf16>
    %cst_56 = arith.constant dense<0.000000e+00> : vector<144x256xf32>
    %53 = tpu.matmul %50, %52, %cst_56 {dimension_numbers = #tpu.dot_dimension_numbers<[1], [0], [0], [1], [0, 0, 1, 1], [], []>} : vector<144x128xbf16>, vector<128x256xbf16>, vector<144x256xf32> -> vector<144x256xf32>
    %54 = arith.addf %48, %53 : vector<144x256xf32>
    %55 = vector.extract_strided_slice %54 {offsets = [0, 0], sizes = [144, 128], strides = [1, 1]} : vector<144x256xf32> to vector<144x128xf32>
    %56 = vector.extract_strided_slice %54 {offsets = [0, 128], sizes = [144, 128], strides = [1, 1]} : vector<144x256xf32> to vector<144x128xf32>
    %cst_57 = arith.constant 0.000000e+00 : f32
    %57 = vector.broadcast %cst_57 : f32 to vector<144x128xf32>
    %58 = arith.subf %57, %56 : vector<144x128xf32>
    %59 = math.exp %58 : vector<144x128xf32>
    %cst_58 = arith.constant 1.000000e+00 : f32
    %60 = vector.broadcast %cst_58 : f32 to vector<144x128xf32>
    %61 = arith.addf %60, %59 : vector<144x128xf32>
    %62 = tpu.reciprocal %61 {approx = true} : vector<144x128xf32> -> vector<144x128xf32>
    %63 = arith.mulf %55, %62 : vector<144x128xf32>
    %c0_59 = arith.constant 0 : index
    %c0_60 = arith.constant 0 : index
    %c0_61 = arith.constant 0 : index
    %c0_62 = arith.constant 0 : index
    %64 = vector.load %arg4[%c0_59, %c0_60, %c0_61, %c0_62] : memref<1x1x144x128xf32, #tpu.memory_space<vmem>>, vector<1x1x144x128xf32>
    %65 = vector.shape_cast %64 : vector<1x1x144x128xf32> to vector<144x128xf32>
    %66 = vector.shape_cast %63 : vector<144x128xf32> to vector<1x1x144x128xf32>
    tpu.vector_store %arg4[%c0_59, %c0_60, %c0_61, %c0_62], %66 {strides = array<i32>} : memref<1x1x144x128xf32, #tpu.memory_space<vmem>>, vector<1x1x144x128xf32>,
    return
  }
  func.func @transform_0(%arg0: i32, %arg1: i32) -> (i32, i32, i32, i32) {
    %c0_i32 = arith.constant 0 : i32
    %c0_i32_0 = arith.constant 0 : i32
    %c0_i32_1 = arith.constant 0 : i32
    return %arg0, %arg1, %c0_i32, %c0_i32_0 : i32, i32, i32, i32
  }
  func.func @transform_1(%arg0: i32, %arg1: i32) -> (i32, i32, i32) {
    %c0_i32 = arith.constant 0 : i32
    %c0_i32_0 = arith.constant 0 : i32
    %c0_i32_1 = arith.constant 0 : i32
    %c0_i32_2 = arith.constant 0 : i32
    return %c0_i32, %c0_i32_0, %c0_i32_1 : i32, i32, i32
  }
  func.func @transform_2(%arg0: i32, %arg1: i32) -> (i32, i32, i32, i32) {
    %c0_i32 = arith.constant 0 : i32
    %c0_i32_0 = arith.constant 0 : i32
    %c0_i32_1 = arith.constant 0 : i32
    return %arg0, %arg1, %c0_i32, %c0_i32_0 : i32, i32, i32, i32
  }
}

</mosaic_0001>

<llo_original>
// kernel: tpu_custom_call.1
$region0: #{tpu_custom_call.1}
  #allocation0 [shape = 'u32[]', space=smem, size = 0x4, offset = 0x4, fixed_abs, tag = 'smem constant byte address 0x4 - core index']
  #allocation1 [shape = 'u32[72,128]{1,0:T(1,128)}', space=vmem, size = 0x9000, scoped, tag = 'internal scratch']
  %s0 = inlined_call_operand.vmem [shape: bf16[2,2,198,128], index: 0, kind: input, shape index: {}]
  %s1 = inlined_call_operand.hbm [shape: bf16[9,128,256], index: 1, kind: input, shape index: {}]
  %s2 = inlined_call_operand.hbm [shape: f32[2,2,144,128], index: 2, kind: output, shape index: {}]
  %s3 = sld [smem:[#allocation0]]
  $region45: #{tpu_custom_call.1} parent=0
    _
  %s5 = ssub.s32 1, %s3
  %s6 = scalar_select 0, %s5, %s3
  $region1: #{tpu_custom_call.1} parent=0
    #allocation2 [shape = 'u8[589824]{0}', space=vmem, size = 0x90000, scoped, tag = 'input window, operand 1, single buffered']
    #allocation3 [shape = 's32[2]{0}', space=sflag, size = 0x8, scoped, tag = 'scoped memory for tpu_custom_call.1']
    #allocation4 [shape = 's32[2]{0}', space=sflag, size = 0x8, scoped, tag = 'scoped memory for tpu_custom_call.1']
    #allocation5 [shape = 'u8[147456]{0}', space=vmem, size = 0x24000, scoped, tag = 'output window, operand 0']
    %7 = vsyncpa [#allocation3], 0
    %8 = vsyncpa [#allocation4], 0
    %s9 = scalar_lea.sflag [#allocation4], 1
    %10 = vsyncpa %s9, 0
    loop: start=0, step=1, limit=6
    $region2: #{tpu_custom_call.1} parent=1 // loop_pre_header
      _
    $region3: #{tpu_custom_call.1} parent=1 // loop_header
      %s12 = sphi 0, %s16
      %p13 = scmp.ge.s32.totalorder %s12, 6
      %s19 = sphi 0, %s31
      %s20 = sphi 0, %s27
      %s21 = sphi 0, %s19
      %s22 = sphi 0, %s20
      %s23 = sphi 0, %s21
      %s24 = sphi 0, %s22
      %s36 = sphi 0, %s38
      %s39 = sphi 0, %s36
      %s40 = sphi 0, %s39
      %s56 = sphi 0, %s40
      %s60 = sphi 0, %s60
      %s62 = sphi 0, %s60
      %s63 = sphi 0, %s62
      %s77 = sphi 0, %s63
      %s85 = sphi 0, %s87
      %s88 = sphi 0, %s85
      %s89 = sphi 0, %s88
      %s105 = sphi 0, %s89
    $region4: #{tpu_custom_call.1} parent=1 // loop_header_branch
      %15 = sbr.rel (%p13) target = $region8
    $region5: #{tpu_custom_call.1} parent=1 // loop_body
      %s17 = ssub.s32 %s12, 1
      %s18 = ssub.s32 %s12, 2
      %s25 = sadd.s32 1, %s20
      %p26 = scmp.ge.s32.totalorder %s25, 2
      %s27 = scalar_select %p26, 0, %s25
      %s28 = sadd.s32 1, %s19
      %s29 = scalar_select %p26, %s28, %s19
      %p30 = scmp.ge.s32.totalorder %s29, 2
      %s31 = scalar_select %p30, 0, %s29
      %s32 = ssub.s32 %s19, %s31
      %s33 = ssub.s32 %s20, %s27
      %s34 = sor.u32 %s32, %s33
      %p35 = scmp.eq.s32.totalorder %s34, 0
      %s37 = sadd.s32 %s36, 1
      %s38 = scalar_select %p35, %s36, %s37
      %p41 = pneg %p35
      %p42 = scmp.eq.s32.totalorder %s12, 3
      %p43 = por %p41, %p42
      %p44 = scmp.ne.s32.totalorder %s36, %s39
      %p45 = scmp.eq.s32.totalorder %s12, 0
      %p46 = por %p44, %p45
      %p47 = scmp.ne.s32.totalorder %s36, %s39
      %p48 = scmp.eq.s32.totalorder %s17, 3
      %p49 = por %p47, %p48
      %p50 = scmp.ne.s32.totalorder %s39, %s40
      %p51 = scmp.eq.s32.totalorder %s17, 0
      %p52 = por %p50, %p51
      %p53 = scmp.ne.s32.totalorder %s39, %s40
      %p54 = scmp.eq.s32.totalorder %s18, 3
      %p55 = por %p53, %p54
      %p57 = scmp.ne.s32.totalorder %s40, %s56
      %p58 = scmp.eq.s32.totalorder %s18, 0
      %p59 = por %p57, %p58
      %s61 = sadd.s32 %s60, 1
      %p64 = scmp.eq.s32.totalorder %s12, 3
      %p65 = scmp.ne.s32.totalorder %s60, %s62
      %p66 = scmp.eq.s32.totalorder %s12, 0
      %p67 = por %p65, %p66
      %p68 = scmp.ne.s32.totalorder %s60, %s62
      %p69 = scmp.eq.s32.totalorder %s17, 3
      %p70 = por %p68, %p69
      %p71 = scmp.ne.s32.totalorder %s62, %s63
      %p72 = scmp.eq.s32.totalorder %s17, 0
      %p73 = por %p71, %p72
      %p74 = scmp.ne.s32.totalorder %s62, %s63
      %p75 = scmp.eq.s32.totalorder %s18, 3
      %p76 = por %p74, %p75
      %p78 = scmp.ne.s32.totalorder %s63, %s77
      %p79 = scmp.eq.s32.totalorder %s18, 0
      %p80 = por %p78, %p79
      %s81 = ssub.s32 %s19, %s31
      %s82 = ssub.s32 %s20, %s27
      %s83 = sor.u32 %s81, %s82
      %p84 = scmp.eq.s32.totalorder %s83, 0
      %s86 = sadd.s32 %s85, 1
      %s87 = scalar_select %p84, %s85, %s86
      %p90 = pneg %p84
      %p91 = scmp.eq.s32.totalorder %s12, 3
      %p92 = por %p90, %p91
      %p93 = scmp.ne.s32.totalorder %s85, %s88
      %p94 = scmp.eq.s32.totalorder %s12, 0
      %p95 = por %p93, %p94
      %p96 = scmp.ne.s32.totalorder %s85, %s88
      %p97 = scmp.eq.s32.totalorder %s17, 3
      %p98 = por %p96, %p97
      %p99 = scmp.ne.s32.totalorder %s88, %s89
      %p100 = scmp.eq.s32.totalorder %s17, 0
      %p101 = por %p99, %p100
      %p102 = scmp.ne.s32.totalorder %s88, %s89
      %p103 = scmp.eq.s32.totalorder %s18, 3
      %p104 = por %p102, %p103
      %p106 = scmp.ne.s32.totalorder %s89, %s105
      %p107 = scmp.eq.s32.totalorder %s18, 0
      %p108 = por %p106, %p107
      %p109 = scmp.le.s32.totalorder 1, %s12
      %p110 = scmp.lt.s32.totalorder %s12, 5
      %p111 = pnand %p109, %p110
      %p112 = pneg %p111
      // Predicated region
      $region9: #{tpu_custom_call.1} parent=5 // pred_check
        _
      $region10: #{tpu_custom_call.1} parent=5 // pred_check_branch
        %114 = sbr.rel (%p111) target = $region12
      $region11: #{tpu_custom_call.1} parent=5 // pred_region
        %s115 = ssub.s32 %s12, 1
        // Predicated region
        $region13: #{tpu_custom_call.1} parent=11 // pred_check
          %p116 = pneg %p73
        $region14: #{tpu_custom_call.1} parent=11 // pred_check_branch
          %118 = sbr.rel (%p116) target = $region16
        $region15: #{tpu_custom_call.1} parent=11 // pred_region
          %120 = vsyncadd [#allocation3], 0
          %s121 = sshll.u32 %s1, 4
          %s122 = int_to_ptr.hbm [resolvable:$true] %s121
          %s123 = sshll.u32 [#allocation2], 4
          %s124 = int_to_ptr.vmem [resolvable:$true] %s123
          %129 = dma.hbm_to_vmem [thread:$0]  %s122, 18432, %s124, [#allocation3], 128, 128, 8
        $region16: #{tpu_custom_call.1} parent=11 // pred_fallthru
          _
      $region12: #{tpu_custom_call.1} parent=5 // pred_fallthru
        _
      %p130 = scmp.lt.s32.totalorder %s12, 4
      // Predicated region
      $region17: #{tpu_custom_call.1} parent=5 // pred_check
        %p131 = pneg %p130
      $region18: #{tpu_custom_call.1} parent=5 // pred_check_branch
        %133 = sbr.rel (%p131) target = $region20
      $region19: #{tpu_custom_call.1} parent=5 // pred_region
        // Predicated region
        $region21: #{tpu_custom_call.1} parent=19 // pred_check
          %p134 = pneg %p46
        $region22: #{tpu_custom_call.1} parent=19 // pred_check_branch
          %136 = sbr.rel (%p134) target = $region24
        $region23: #{tpu_custom_call.1} parent=19 // pred_region
          %p137 = scmp.lt.s32.totalorder %s19, 1
          %s138 = scalar_select %p137, %s19, 1
          %p139 = scmp.lt.s32.totalorder %s20, 1
          %s140 = scalar_select %p139, %s20, 1
          %s141 = smul.addr %s140, 25
          %s142 = smul.addr %s138, 50
          %s143 = sadd.s32 %s141, %s142
          %s144 = smul.addr %s143, 4
          %s145 = scalar_lea.vmem %s0, %s144
        $region24: #{tpu_custom_call.1} parent=19 // pred_fallthru
          _
      $region20: #{tpu_custom_call.1} parent=5 // pred_fallthru
        _
      %p146 = scmp.le.s32.totalorder 1, %s12
      %p147 = scmp.lt.s32.totalorder %s12, 5
      %p148 = pnand %p146, %p147
      %p149 = pneg %p148
      // Predicated region
      $region25: #{tpu_custom_call.1} parent=5 // pred_check
        _
      $region26: #{tpu_custom_call.1} parent=5 // pred_check_branch
        %151 = sbr.rel (%p148) target = $region28
      $region27: #{tpu_custom_call.1} parent=5 // pred_region
        %s152 = ssub.s32 %s12, 1
        // Predicated region
        $region29: #{tpu_custom_call.1} parent=27 // pred_check
          %p153 = pneg %p73
        $region30: #{tpu_custom_call.1} parent=27 // pred_check_branch
          %155 = sbr.rel (%p153) target = $region32
        $region31: #{tpu_custom_call.1} parent=27 // pred_region
          %157 = dma.done [#allocation3], 18432
        $region32: #{tpu_custom_call.1} parent=27 // pred_fallthru
          _
        %p158 = scmp.lt.s32.totalorder %s21, 1
        %s159 = scalar_select %p158, %s21, 1
        %p160 = scmp.lt.s32.totalorder %s22, 1
        %s161 = scalar_select %p160, %s22, 1
        %s162 = smul.addr %s161, 25
        %s163 = smul.addr %s159, 50
        %s164 = sadd.s32 %s162, %s163
        %s165 = smul.addr %s164, 4
        %s166 = scalar_lea.vmem %s0, %s165
        %p167 = pneg %p52
        %p168 = pneg %p49
        %p169 = pneg %p73
        %p170 = pneg %p70
        %p171 = pneg %p101
        %p172 = pneg %p98
        %s173 = sand.u32 %s88, 1
        %s174 = scalar_lea.sflag [#allocation4], %s173
        %s175 = sand.u32 %s88, 1
        %s176 = smul.addr %s175, 144
        %s177 = scalar_lea.vmem [#allocation5], %s176
        %p178 = scmp.lt.s32.totalorder %s21, 1
        %s179 = scalar_select %p178, %s21, 1
        %p180 = scmp.lt.s32.totalorder %s22, 1
        %s181 = scalar_select %p180, %s22, 1
        %s182 = smul.addr %s181, 25
        %s183 = smul.addr %s179, 50
        %s184 = sadd.s32 %s182, %s183
        %s185 = smul.addr %s184, 4
        %s186 = scalar_lea.vmem %s0, %s185
        %v187 = vld [vmem:[%s186] sm:$0xf]
        %v188 = vld [vmem:[%s186 + $0x4] sm:$0xf]
        %v189 = vld [vmem:[%s186 + $0x8] sm:$0xf]
        %v190 = vld [vmem:[%s186 + $0xc] sm:$0xf]
        %v191 = vld [vmem:[%s186 + $0x10] sm:$0xf]
        %v192 = vld [vmem:[%s186 + $0x14] sm:$0xf]
        %v193 = vld [vmem:[%s186 + $0x18] sm:$0xf]
        %v194 = vld [vmem:[%s186 + $0x1c] sm:$0xf]
        %v195 = vld [vmem:[%s186 + $0x20] sm:$0xf]
        %v196 = vld [vmem:[%s186 + $0x24] sm:$0xf]
        %v197 = vld [vmem:[%s186 + $0x28] sm:$0xf]
        %v198 = vld [vmem:[%s186 + $0x2c] sm:$0xf]
        %v199 = vld [vmem:[%s186 + $0x30] sm:$0xf]
        %v200 = vld [vmem:[%s186 + $0x34] sm:$0xf]
        %v201 = vld [vmem:[%s186 + $0x38] sm:$0xf]
        %v202 = vld [vmem:[%s186 + $0x3c] sm:$0xf]
        %v203 = vld [vmem:[%s186 + $0x40] sm:$0xf]
        %v204 = vld [vmem:[%s186 + $0x44] sm:$0xf]
        %v205 = vld [vmem:[#allocation2] sm:$0xff]
        %v206 = vld [vmem:[#allocation2 + $0x8] sm:$0xff]
        %v207 = vld [vmem:[#allocation2 + $0x10] sm:$0xff]
        %v208 = vld [vmem:[#allocation2 + $0x18] sm:$0xff]
        %v209 = vld [vmem:[#allocation2 + $0x20] sm:$0xff]
        %v210 = vld [vmem:[#allocation2 + $0x28] sm:$0xff]
        %v211 = vld [vmem:[#allocation2 + $0x30] sm:$0xff]
        %v212 = vld [vmem:[#allocation2 + $0x38] sm:$0xff]
        %v213 = vld [vmem:[#allocation2 + $0x40] sm:$0xff]
        %v214 = vld [vmem:[#allocation2 + $0x48] sm:$0xff]
        %v215 = vld [vmem:[#allocation2 + $0x50] sm:$0xff]
        %v216 = vld [vmem:[#allocation2 + $0x58] sm:$0xff]
        %v217 = vld [vmem:[#allocation2 + $0x60] sm:$0xff]
        %v218 = vld [vmem:[#allocation2 + $0x68] sm:$0xff]
        %v219 = vld [vmem:[#allocation2 + $0x70] sm:$0xff]
        %v220 = vld [vmem:[#allocation2 + $0x78] sm:$0xff]
        %v221 = vld [vmem:[%s186 + $0x48] sm:$0x1]
        %s222 = scalar_lea.vmem [#allocation2], 128
        %v223 = vld [vmem:[%s222] sm:$0xff]
        %v224 = vld [vmem:[%s222 + $0x8] sm:$0xff]
        %v225 = vld [vmem:[%s222 + $0x10] sm:$0xff]
        %v226 = vld [vmem:[%s222 + $0x18] sm:$0xff]
        %v227 = vld [vmem:[%s222 + $0x20] sm:$0xff]
        %v228 = vld [vmem:[%s222 + $0x28] sm:$0xff]
        %v229 = vld [vmem:[%s222 + $0x30] sm:$0xff]
        %v230 = vld [vmem:[%s222 + $0x38] sm:$0xff]
        %v231 = vld [vmem:[%s222 + $0x40] sm:$0xff]
        %v232 = vld [vmem:[%s222 + $0x48] sm:$0xff]
        %v233 = vld [vmem:[%s222 + $0x50] sm:$0xff]
        %v234 = vld [vmem:[%s222 + $0x58] sm:$0xff]
        %v235 = vld [vmem:[%s222 + $0x60] sm:$0xff]
        %v236 = vld [vmem:[%s222 + $0x68] sm:$0xff]
        %v237 = vld [vmem:[%s222 + $0x70] sm:$0xff]
        %v238 = vld [vmem:[%s222 + $0x78] sm:$0xff]
        %v258 = vunpack.c.l.b16 %v187
        %v259 = vunpack.c.l.b16 %v188
        %v260 = vunpack.c.l.b16 %v189
        %v261 = vunpack.c.l.b16 %v190
        %v262 = vunpack.c.l.b16 %v191
        %v263 = vunpack.c.l.b16 %v192
        %v264 = vunpack.c.l.b16 %v193
        %v265 = vunpack.c.l.b16 %v194
        %v266 = vunpack.c.l.b16 %v195
        %v267 = vunpack.c.l.b16 %v196
        %v268 = vunpack.c.l.b16 %v197
        %v269 = vunpack.c.l.b16 %v198
        %v270 = vunpack.c.l.b16 %v199
        %v271 = vunpack.c.l.b16 %v200
        %v272 = vunpack.c.l.b16 %v201
        %v273 = vunpack.c.l.b16 %v202
        %v274 = vunpack.c.l.b16 %v203
        %v275 = vunpack.c.l.b16 %v204
        %v276 = vunpack.c.l.b16 %v221
        %v277 = vpack.c.b16 %v259, %v258
        %v278 = vpack.c.b16 %v261, %v260
        %v279 = vpack.c.b16 %v263, %v262
        %v280 = vpack.c.b16 %v265, %v264
        %v281 = vpack.c.b16 %v267, %v266
        %v282 = vpack.c.b16 %v269, %v268
        %v283 = vpack.c.b16 %v271, %v270
        %v284 = vpack.c.b16 %v273, %v272
        %v285 = vpack.c.b16 %v275, %v274
        %v286 = vpack.c.b16 %v276, %v276
        %vm287 = vsmask.f32 7424
        %v289 = vshrl.u32 %v277, 16
        %v291 = vshll.u32 %v277, 16
        %v293 = vrot.slane %v291, 1
        %v294 = vor.u32 %v289, %v293
        %v296 = vshll.u32 %v278, 16
        %v298 = vrot.slane %v296, 1
        %v299 = vsel %vm287, %v294, %v298
        %v300 = vshrl.u32 %v278, 16
        %v302 = vor.u32 %v300, %v298
        %v304 = vshll.u32 %v279, 16
        %v306 = vrot.slane %v304, 1
        %v307 = vsel %vm287, %v302, %v306
        %v308 = vshrl.u32 %v279, 16
        %v310 = vor.u32 %v308, %v306
        %v312 = vshll.u32 %v280, 16
        %v314 = vrot.slane %v312, 1
        %v315 = vsel %vm287, %v310, %v314
        %v316 = vshrl.u32 %v280, 16
        %v318 = vor.u32 %v316, %v314
        %v320 = vshll.u32 %v281, 16
        %v322 = vrot.slane %v320, 1
        %v323 = vsel %vm287, %v318, %v322
        %v324 = vshrl.u32 %v281, 16
        %v326 = vor.u32 %v324, %v322
        %v328 = vshll.u32 %v282, 16
        %v330 = vrot.slane %v328, 1
        %v331 = vsel %vm287, %v326, %v330
        %v332 = vshrl.u32 %v282, 16
        %v334 = vor.u32 %v332, %v330
        %v336 = vshll.u32 %v283, 16
        %v338 = vrot.slane %v336, 1
        %v339 = vsel %vm287, %v334, %v338
        %v340 = vshrl.u32 %v283, 16
        %v342 = vor.u32 %v340, %v338
        %v344 = vshll.u32 %v284, 16
        %v346 = vrot.slane %v344, 1
        %v347 = vsel %vm287, %v342, %v346
        %v348 = vshrl.u32 %v284, 16
        %v350 = vor.u32 %v348, %v346
        %v352 = vshll.u32 %v285, 16
        %v354 = vrot.slane %v352, 1
        %v355 = vsel %vm287, %v350, %v354
        %v356 = vshrl.u32 %v285, 16
        %v358 = vor.u32 %v356, %v354
        %v360 = vshll.u32 %v286, 16
        %v362 = vrot.slane %v360, 1
        %v363 = vsel %vm287, %v358, %v362
        %v389 = vunpack.c.l.b16 %v223
        %v390 = vunpack.c.h.b16 %v223
        %v391 = vunpack.c.l.b16 %v224
        %v392 = vunpack.c.h.b16 %v224
        %v393 = vunpack.c.l.b16 %v225
        %v394 = vunpack.c.h.b16 %v225
        %v395 = vunpack.c.l.b16 %v226
        %v396 = vunpack.c.h.b16 %v226
        %v397 = vunpack.c.l.b16 %v227
        %v398 = vunpack.c.h.b16 %v227
        %v399 = vunpack.c.l.b16 %v228
        %v400 = vunpack.c.h.b16 %v228
        %v401 = vunpack.c.l.b16 %v229
        %v402 = vunpack.c.h.b16 %v229
        %v403 = vunpack.c.l.b16 %v230
        %v404 = vunpack.c.h.b16 %v230
        %v405 = vunpack.c.l.b16 %v231
        %v406 = vunpack.c.h.b16 %v231
        %v407 = vunpack.c.l.b16 %v232
        %v408 = vunpack.c.h.b16 %v232
        %v409 = vunpack.c.l.b16 %v233
        %v410 = vunpack.c.h.b16 %v233
        %v411 = vunpack.c.l.b16 %v234
        %v412 = vunpack.c.h.b16 %v234
        %v413 = vunpack.c.l.b16 %v235
        %v414 = vunpack.c.h.b16 %v235
        %v415 = vunpack.c.l.b16 %v236
        %v416 = vunpack.c.h.b16 %v236
        %v417 = vunpack.c.l.b16 %v237
        %v418 = vunpack.c.h.b16 %v237
        %v419 = vunpack.c.l.b16 %v238
        %v420 = vunpack.c.h.b16 %v238
        %v421 = vpack.c.b16 %v391, %v389
        %v422 = vpack.c.b16 %v392, %v390
        %v423 = vpack.c.b16 %v395, %v393
        %v424 = vpack.c.b16 %v396, %v394
        %v425 = vpack.c.b16 %v399, %v397
        %v426 = vpack.c.b16 %v400, %v398
        %v427 = vpack.c.b16 %v403, %v401
        %v428 = vpack.c.b16 %v404, %v402
        %v429 = vpack.c.b16 %v407, %v405
        %v430 = vpack.c.b16 %v408, %v406
        %v431 = vpack.c.b16 %v411, %v409
        %v432 = vpack.c.b16 %v412, %v410
        %v433 = vpack.c.b16 %v415, %v413
        %v434 = vpack.c.b16 %v416, %v414
        %v435 = vpack.c.b16 %v419, %v417
        %v436 = vpack.c.b16 %v420, %v418
        %453 = vmatpush.bf16.msra.mxu0 %v435
        %454 = vmatpush.bf16.msra.mxu0 %v433
        %455 = vmatpush.bf16.msra.mxu0 %v431
        %456 = vmatpush.bf16.msra.mxu0 %v429
        %457 = vmatpush.bf16.msra.mxu0 %v427
        %458 = vmatpush.bf16.msra.mxu0 %v425
        %459 = vmatpush.bf16.msra.mxu0 %v423
        %460 = vmatpush.bf16.msra.mxu0 %v421
        %461 = vmatmul.bf16.gmra.mxu0 %v299
        %v462 = vpop.f32.mrf.mxu0
        %v463 = vadd.f32 0.0, %v462
        %v464 = vpop.f32.mrf.mxu0
        %v465 = vadd.f32 0.0, %v464
        %466 = vmatmul.bf16.gmra.mxu0 %v307
        %v467 = vpop.f32.mrf.mxu0
        %v468 = vadd.f32 0.0, %v467
        %v469 = vpop.f32.mrf.mxu0
        %v470 = vadd.f32 0.0, %v469
        %471 = vmatmul.bf16.gmra.mxu0 %v315
        %v472 = vpop.f32.mrf.mxu0
        %v473 = vadd.f32 0.0, %v472
        %v474 = vpop.f32.mrf.mxu0
        %v475 = vadd.f32 0.0, %v474
        %476 = vmatmul.bf16.gmra.mxu0 %v323
        %v477 = vpop.f32.mrf.mxu0
        %v478 = vadd.f32 0.0, %v477
        %v479 = vpop.f32.mrf.mxu0
        %v480 = vadd.f32 0.0, %v479
        %481 = vmatmul.bf16.gmra.mxu0 %v331
        %v482 = vpop.f32.mrf.mxu0
        %v483 = vadd.f32 0.0, %v482
        %v484 = vpop.f32.mrf.mxu0
        %v485 = vadd.f32 0.0, %v484
        %486 = vmatmul.bf16.gmra.mxu0 %v339
        %v487 = vpop.f32.mrf.mxu0
        %v488 = vadd.f32 0.0, %v487
        %v489 = vpop.f32.mrf.mxu0
        %v490 = vadd.f32 0.0, %v489
        %491 = vmatmul.bf16.gmra.mxu0 %v347
        %v492 = vpop.f32.mrf.mxu0
        %v493 = vadd.f32 0.0, %v492
        %v494 = vpop.f32.mrf.mxu0
        %v495 = vadd.f32 0.0, %v494
        %496 = vmatmul.bf16.gmra.mxu0 %v355
        %v497 = vpop.f32.mrf.mxu0
        %v498 = vadd.f32 0.0, %v497
        %v499 = vpop.f32.mrf.mxu0
        %v500 = vadd.f32 0.0, %v499
        %501 = vmatmul.bf16.gmra.mxu0 %v363
        %v502 = vpop.f32.mrf.mxu0
        %v503 = vadd.f32 0.0, %v502
        %v504 = vpop.f32.mrf.mxu0
        %v505 = vadd.f32 0.0, %v504
        %506 = vdwg.mxu0
        %507 = vmatpush.bf16.msra.mxu0 %v436
        %508 = vmatpush.bf16.msra.mxu0 %v434
        %509 = vmatpush.bf16.msra.mxu0 %v432
        %510 = vmatpush.bf16.msra.mxu0 %v430
        %511 = vmatpush.bf16.msra.mxu0 %v428
        %512 = vmatpush.bf16.msra.mxu0 %v426
        %513 = vmatpush.bf16.msra.mxu0 %v424
        %514 = vmatpush.bf16.msra.mxu0 %v422
        %515 = vmatmul.bf16.gmra.mxu0 %v299
        %v516 = vpop.f32.mrf.mxu0
        %v517 = vadd.f32 0.0, %v516
        %v518 = vpop.f32.mrf.mxu0
        %v519 = vadd.f32 0.0, %v518
        %520 = vmatmul.bf16.gmra.mxu0 %v307
        %v521 = vpop.f32.mrf.mxu0
        %v522 = vadd.f32 0.0, %v521
        %v523 = vpop.f32.mrf.mxu0
        %v524 = vadd.f32 0.0, %v523
        %525 = vmatmul.bf16.gmra.mxu0 %v315
        %v526 = vpop.f32.mrf.mxu0
        %v527 = vadd.f32 0.0, %v526
        %v528 = vpop.f32.mrf.mxu0
        %v529 = vadd.f32 0.0, %v528
        %530 = vmatmul.bf16.gmra.mxu0 %v323
        %v531 = vpop.f32.mrf.mxu0
        %v532 = vadd.f32 0.0, %v531
        %v533 = vpop.f32.mrf.mxu0
        %v534 = vadd.f32 0.0, %v533
        %535 = vmatmul.bf16.gmra.mxu0 %v331
        %v536 = vpop.f32.mrf.mxu0
        %v537 = vadd.f32 0.0, %v536
        %v538 = vpop.f32.mrf.mxu0
        %v539 = vadd.f32 0.0, %v538
        %540 = vmatmul.bf16.gmra.mxu0 %v339
        %v541 = vpop.f32.mrf.mxu0
        %v542 = vadd.f32 0.0, %v541
        %v543 = vpop.f32.mrf.mxu0
        %v544 = vadd.f32 0.0, %v543
        %545 = vmatmul.bf16.gmra.mxu0 %v347
        %v546 = vpop.f32.mrf.mxu0
        %v547 = vadd.f32 0.0, %v546
        %v548 = vpop.f32.mrf.mxu0
        %v549 = vadd.f32 0.0, %v548
        %550 = vmatmul.bf16.gmra.mxu0 %v355
        %v551 = vpop.f32.mrf.mxu0
        %v552 = vadd.f32 0.0, %v551
        %v553 = vpop.f32.mrf.mxu0
        %v554 = vadd.f32 0.0, %v553
        %555 = vmatmul.bf16.gmra.mxu0 %v363
        %v556 = vpop.f32.mrf.mxu0
        %v557 = vadd.f32 0.0, %v556
        %v558 = vpop.f32.mrf.mxu0
        %v559 = vadd.f32 0.0, %v558
        %560 = vdwg.mxu0
        %v586 = vunpack.c.l.b16 %v205
        %v587 = vunpack.c.h.b16 %v205
        %v588 = vunpack.c.l.b16 %v206
        %v589 = vunpack.c.h.b16 %v206
        %v590 = vunpack.c.l.b16 %v207
        %v591 = vunpack.c.h.b16 %v207
        %v592 = vunpack.c.l.b16 %v208
        %v593 = vunpack.c.h.b16 %v208
        %v594 = vunpack.c.l.b16 %v209
        %v595 = vunpack.c.h.b16 %v209
        %v596 = vunpack.c.l.b16 %v210
        %v597 = vunpack.c.h.b16 %v210
        %v598 = vunpack.c.l.b16 %v211
        %v599 = vunpack.c.h.b16 %v211
        %v600 = vunpack.c.l.b16 %v212
        %v601 = vunpack.c.h.b16 %v212
        %v602 = vunpack.c.l.b16 %v213
        %v603 = vunpack.c.h.b16 %v213
        %v604 = vunpack.c.l.b16 %v214
        %v605 = vunpack.c.h.b16 %v214
        %v606 = vunpack.c.l.b16 %v215
        %v607 = vunpack.c.h.b16 %v215
        %v608 = vunpack.c.l.b16 %v216
        %v609 = vunpack.c.h.b16 %v216
        %v610 = vunpack.c.l.b16 %v217
        %v611 = vunpack.c.h.b16 %v217
        %v612 = vunpack.c.l.b16 %v218
        %v613 = vunpack.c.h.b16 %v218
        %v614 = vunpack.c.l.b16 %v219
        %v615 = vunpack.c.h.b16 %v219
        %v616 = vunpack.c.l.b16 %v220
        %v617 = vunpack.c.h.b16 %v220
        %v618 = vpack.c.b16 %v588, %v586
        %v619 = vpack.c.b16 %v589, %v587
        %v620 = vpack.c.b16 %v592, %v590
        %v621 = vpack.c.b16 %v593, %v591
        %v622 = vpack.c.b16 %v596, %v594
        %v623 = vpack.c.b16 %v597, %v595
        %v624 = vpack.c.b16 %v600, %v598
        %v625 = vpack.c.b16 %v601, %v599
        %v626 = vpack.c.b16 %v604, %v602
        %v627 = vpack.c.b16 %v605, %v603
        %v628 = vpack.c.b16 %v608, %v606
        %v629 = vpack.c.b16 %v609, %v607
        %v630 = vpack.c.b16 %v612, %v610
        %v631 = vpack.c.b16 %v613, %v611
        %v632 = vpack.c.b16 %v616, %v614
        %v633 = vpack.c.b16 %v617, %v615
        %650 = vmatpush.bf16.msra.mxu0 %v632
        %651 = vmatpush.bf16.msra.mxu0 %v630
        %652 = vmatpush.bf16.msra.mxu0 %v628
        %653 = vmatpush.bf16.msra.mxu0 %v626
        %654 = vmatpush.bf16.msra.mxu0 %v624
        %655 = vmatpush.bf16.msra.mxu0 %v622
        %656 = vmatpush.bf16.msra.mxu0 %v620
        %657 = vmatpush.bf16.msra.mxu0 %v618
        %658 = vmatmul.bf16.gmra.mxu0 %v277
        %v659 = vpop.f32.mrf.mxu0
        %v660 = vadd.f32 %v463, %v659
        %v661 = vpop.f32.mrf.mxu0
        %v662 = vadd.f32 %v465, %v661
        %663 = vmatmul.bf16.gmra.mxu0 %v278
        %v664 = vpop.f32.mrf.mxu0
        %v665 = vadd.f32 %v468, %v664
        %v666 = vpop.f32.mrf.mxu0
        %v667 = vadd.f32 %v470, %v666
        %668 = vmatmul.bf16.gmra.mxu0 %v279
        %v669 = vpop.f32.mrf.mxu0
        %v670 = vadd.f32 %v473, %v669
        %v671 = vpop.f32.mrf.mxu0
        %v672 = vadd.f32 %v475, %v671
        %673 = vmatmul.bf16.gmra.mxu0 %v280
        %v674 = vpop.f32.mrf.mxu0
        %v675 = vadd.f32 %v478, %v674
        %v676 = vpop.f32.mrf.mxu0
        %v677 = vadd.f32 %v480, %v676
        %678 = vmatmul.bf16.gmra.mxu0 %v281
        %v679 = vpop.f32.mrf.mxu0
        %v680 = vadd.f32 %v483, %v679
        %v681 = vpop.f32.mrf.mxu0
        %v682 = vadd.f32 %v485, %v681
        %683 = vmatmul.bf16.gmra.mxu0 %v282
        %v684 = vpop.f32.mrf.mxu0
        %v685 = vadd.f32 %v488, %v684
        %v686 = vpop.f32.mrf.mxu0
        %v687 = vadd.f32 %v490, %v686
        %688 = vmatmul.bf16.gmra.mxu0 %v283
        %v689 = vpop.f32.mrf.mxu0
        %v690 = vadd.f32 %v493, %v689
        %v691 = vpop.f32.mrf.mxu0
        %v692 = vadd.f32 %v495, %v691
        %693 = vmatmul.bf16.gmra.mxu0 %v284
        %v694 = vpop.f32.mrf.mxu0
        %v695 = vadd.f32 %v498, %v694
        %v696 = vpop.f32.mrf.mxu0
        %v697 = vadd.f32 %v500, %v696
        %698 = vmatmul.bf16.gmra.mxu0 %v285
        %v699 = vpop.f32.mrf.mxu0
        %v700 = vadd.f32 %v503, %v699
        %v701 = vpop.f32.mrf.mxu0
        %v702 = vadd.f32 %v505, %v701
        %703 = vdwg.mxu0
        %704 = vmatpush.bf16.msra.mxu0 %v633
        %705 = vmatpush.bf16.msra.mxu0 %v631
        %706 = vmatpush.bf16.msra.mxu0 %v629
        %707 = vmatpush.bf16.msra.mxu0 %v627
        %708 = vmatpush.bf16.msra.mxu0 %v625
        %709 = vmatpush.bf16.msra.mxu0 %v623
        %710 = vmatpush.bf16.msra.mxu0 %v621
        %711 = vmatpush.bf16.msra.mxu0 %v619
        %712 = vmatmul.bf16.gmra.mxu0 %v277
        %v713 = vpop.f32.mrf.mxu0
        %v714 = vadd.f32 %v517, %v713
        %v715 = vpop.f32.mrf.mxu0
        %v716 = vadd.f32 %v519, %v715
        %717 = vmatmul.bf16.gmra.mxu0 %v278
        %v718 = vpop.f32.mrf.mxu0
        %v719 = vadd.f32 %v522, %v718
        %v720 = vpop.f32.mrf.mxu0
        %v721 = vadd.f32 %v524, %v720
        %722 = vmatmul.bf16.gmra.mxu0 %v279
        %v723 = vpop.f32.mrf.mxu0
        %v724 = vadd.f32 %v527, %v723
        %v725 = vpop.f32.mrf.mxu0
        %v726 = vadd.f32 %v529, %v725
        %727 = vmatmul.bf16.gmra.mxu0 %v280
        %v728 = vpop.f32.mrf.mxu0
        %v729 = vadd.f32 %v532, %v728
        %v730 = vpop.f32.mrf.mxu0
        %v731 = vadd.f32 %v534, %v730
        %732 = vmatmul.bf16.gmra.mxu0 %v281
        %v733 = vpop.f32.mrf.mxu0
        %v734 = vadd.f32 %v537, %v733
        %v735 = vpop.f32.mrf.mxu0
        %v736 = vadd.f32 %v539, %v735
        %737 = vmatmul.bf16.gmra.mxu0 %v282
        %v738 = vpop.f32.mrf.mxu0
        %v739 = vadd.f32 %v542, %v738
        %v740 = vpop.f32.mrf.mxu0
        %v741 = vadd.f32 %v544, %v740
        %742 = vmatmul.bf16.gmra.mxu0 %v283
        %v743 = vpop.f32.mrf.mxu0
        %v744 = vadd.f32 %v547, %v743
        %v745 = vpop.f32.mrf.mxu0
        %v746 = vadd.f32 %v549, %v745
        %747 = vmatmul.bf16.gmra.mxu0 %v284
        %v748 = vpop.f32.mrf.mxu0
        %v749 = vadd.f32 %v552, %v748
        %v750 = vpop.f32.mrf.mxu0
        %v751 = vadd.f32 %v554, %v750
        %752 = vmatmul.bf16.gmra.mxu0 %v285
        %v753 = vpop.f32.mrf.mxu0
        %v754 = vadd.f32 %v557, %v753
        %v755 = vpop.f32.mrf.mxu0
        %v756 = vadd.f32 %v559, %v755
        %757 = vdwg.mxu0
        %v758 = vld [vmem:[%s186] sm:$0xe]
        %s759 = scalar_lea.vmem [#allocation2], 256
        %v760 = vld [vmem:[%s759] sm:$0xff]
        %v761 = vld [vmem:[%s759 + $0x8] sm:$0xff]
        %v762 = vld [vmem:[%s759 + $0x10] sm:$0xff]
        %v763 = vld [vmem:[%s759 + $0x18] sm:$0xff]
        %v764 = vld [vmem:[%s759 + $0x20] sm:$0xff]
        %v765 = vld [vmem:[%s759 + $0x28] sm:$0xff]
        %v766 = vld [vmem:[%s759 + $0x30] sm:$0xff]
        %v767 = vld [vmem:[%s759 + $0x38] sm:$0xff]
        %v768 = vld [vmem:[%s759 + $0x40] sm:$0xff]
        %v769 = vld [vmem:[%s759 + $0x48] sm:$0xff]
        %v770 = vld [vmem:[%s759 + $0x50] sm:$0xff]
        %v771 = vld [vmem:[%s759 + $0x58] sm:$0xff]
        %v772 = vld [vmem:[%s759 + $0x60] sm:$0xff]
        %v773 = vld [vmem:[%s759 + $0x68] sm:$0xff]
        %v774 = vld [vmem:[%s759 + $0x70] sm:$0xff]
        %v775 = vld [vmem:[%s759 + $0x78] sm:$0xff]
        %v777 = vunpack.c.l.b16 %v758
        %v778 = vpack.c.b16 %v259, %v777
        %vm779 = vcmask 1046528
        %v780 = vrot.slane %v778, 1
        %v781 = vrot.slane %v278, 1
        %v782 = vsel %vm779, %v780, %v781
        %v783 = vrot.slane %v279, 1
        %v784 = vsel %vm779, %v781, %v783
        %v785 = vrot.slane %v280, 1
        %v786 = vsel %vm779, %v783, %v785
        %v787 = vrot.slane %v281, 1
        %v788 = vsel %vm779, %v785, %v787
        %v789 = vrot.slane %v282, 1
        %v790 = vsel %vm779, %v787, %v789
        %v791 = vrot.slane %v283, 1
        %v792 = vsel %vm779, %v789, %v791
        %v793 = vrot.slane %v284, 1
        %v794 = vsel %vm779, %v791, %v793
        %v795 = vrot.slane %v285, 1
        %v796 = vsel %vm779, %v793, %v795
        %v797 = vrot.slane %v286, 1
        %v798 = vsel %vm779, %v795, %v797
        %v824 = vunpack.c.l.b16 %v760
        %v825 = vunpack.c.h.b16 %v760
        %v826 = vunpack.c.l.b16 %v761
        %v827 = vunpack.c.h.b16 %v761
        %v828 = vunpack.c.l.b16 %v762
        %v829 = vunpack.c.h.b16 %v762
        %v830 = vunpack.c.l.b16 %v763
        %v831 = vunpack.c.h.b16 %v763
        %v832 = vunpack.c.l.b16 %v764
        %v833 = vunpack.c.h.b16 %v764
        %v834 = vunpack.c.l.b16 %v765
        %v835 = vunpack.c.h.b16 %v765
        %v836 = vunpack.c.l.b16 %v766
        %v837 = vunpack.c.h.b16 %v766
        %v838 = vunpack.c.l.b16 %v767
        %v839 = vunpack.c.h.b16 %v767
        %v840 = vunpack.c.l.b16 %v768
        %v841 = vunpack.c.h.b16 %v768
        %v842 = vunpack.c.l.b16 %v769
        %v843 = vunpack.c.h.b16 %v769
        %v844 = vunpack.c.l.b16 %v770
        %v845 = vunpack.c.h.b16 %v770
        %v846 = vunpack.c.l.b16 %v771
        %v847 = vunpack.c.h.b16 %v771
        %v848 = vunpack.c.l.b16 %v772
        %v849 = vunpack.c.h.b16 %v772
        %v850 = vunpack.c.l.b16 %v773
        %v851 = vunpack.c.h.b16 %v773
        %v852 = vunpack.c.l.b16 %v774
        %v853 = vunpack.c.h.b16 %v774
        %v854 = vunpack.c.l.b16 %v775
        %v855 = vunpack.c.h.b16 %v775
        %v856 = vpack.c.b16 %v826, %v824
        %v857 = vpack.c.b16 %v827, %v825
        %v858 = vpack.c.b16 %v830, %v828
        %v859 = vpack.c.b16 %v831, %v829
        %v860 = vpack.c.b16 %v834, %v832
        %v861 = vpack.c.b16 %v835, %v833
        %v862 = vpack.c.b16 %v838, %v836
        %v863 = vpack.c.b16 %v839, %v837
        %v864 = vpack.c.b16 %v842, %v840
        %v865 = vpack.c.b16 %v843, %v841
        %v866 = vpack.c.b16 %v846, %v844
        %v867 = vpack.c.b16 %v847, %v845
        %v868 = vpack.c.b16 %v850, %v848
        %v869 = vpack.c.b16 %v851, %v849
        %v870 = vpack.c.b16 %v854, %v852
        %v871 = vpack.c.b16 %v855, %v853
        %888 = vmatpush.bf16.msra.mxu0 %v870
        %889 = vmatpush.bf16.msra.mxu0 %v868
        %890 = vmatpush.bf16.msra.mxu0 %v866
        %891 = vmatpush.bf16.msra.mxu0 %v864
        %892 = vmatpush.bf16.msra.mxu0 %v862
        %893 = vmatpush.bf16.msra.mxu0 %v860
        %894 = vmatpush.bf16.msra.mxu0 %v858
        %895 = vmatpush.bf16.msra.mxu0 %v856
        %896 = vmatmul.bf16.gmra.mxu0 %v782
        %v897 = vpop.f32.mrf.mxu0
        %v898 = vadd.f32 0.0, %v897
        %v899 = vpop.f32.mrf.mxu0
        %v900 = vadd.f32 0.0, %v899
        %901 = vmatmul.bf16.gmra.mxu0 %v784
        %v902 = vpop.f32.mrf.mxu0
        %v903 = vadd.f32 0.0, %v902
        %v904 = vpop.f32.mrf.mxu0
        %v905 = vadd.f32 0.0, %v904
        %906 = vmatmul.bf16.gmra.mxu0 %v786
        %v907 = vpop.f32.mrf.mxu0
        %v908 = vadd.f32 0.0, %v907
        %v909 = vpop.f32.mrf.mxu0
        %v910 = vadd.f32 0.0, %v909
        %911 = vmatmul.bf16.gmra.mxu0 %v788
        %v912 = vpop.f32.mrf.mxu0
        %v913 = vadd.f32 0.0, %v912
        %v914 = vpop.f32.mrf.mxu0
        %v915 = vadd.f32 0.0, %v914
        %916 = vmatmul.bf16.gmra.mxu0 %v790
        %v917 = vpop.f32.mrf.mxu0
        %v918 = vadd.f32 0.0, %v917
        %v919 = vpop.f32.mrf.mxu0
        %v920 = vadd.f32 0.0, %v919
        %921 = vmatmul.bf16.gmra.mxu0 %v792
        %v922 = vpop.f32.mrf.mxu0
        %v923 = vadd.f32 0.0, %v922
        %v924 = vpop.f32.mrf.mxu0
        %v925 = vadd.f32 0.0, %v924
        %926 = vmatmul.bf16.gmra.mxu0 %v794
        %v927 = vpop.f32.mrf.mxu0
        %v928 = vadd.f32 0.0, %v927
        %v929 = vpop.f32.mrf.mxu0
        %v930 = vadd.f32 0.0, %v929
        %931 = vmatmul.bf16.gmra.mxu0 %v796
        %v932 = vpop.f32.mrf.mxu0
        %v933 = vadd.f32 0.0, %v932
        %v934 = vpop.f32.mrf.mxu0
        %v935 = vadd.f32 0.0, %v934
        %936 = vmatmul.bf16.gmra.mxu0 %v798
        %v937 = vpop.f32.mrf.mxu0
        %v938 = vadd.f32 0.0, %v937
        %v939 = vpop.f32.mrf.mxu0
        %v940 = vadd.f32 0.0, %v939
        %941 = vdwg.mxu0
        %942 = vmatpush.bf16.msra.mxu0 %v871
        %943 = vmatpush.bf16.msra.mxu0 %v869
        %944 = vmatpush.bf16.msra.mxu0 %v867
        %945 = vmatpush.bf16.msra.mxu0 %v865
        %946 = vmatpush.bf16.msra.mxu0 %v863
        %947 = vmatpush.bf16.msra.mxu0 %v861
        %948 = vmatpush.bf16.msra.mxu0 %v859
        %949 = vmatpush.bf16.msra.mxu0 %v857
        %950 = vmatmul.bf16.gmra.mxu0 %v782
        %v951 = vpop.f32.mrf.mxu0
        %v952 = vadd.f32 0.0, %v951
        %v953 = vpop.f32.mrf.mxu0
        %v954 = vadd.f32 0.0, %v953
        %955 = vmatmul.bf16.gmra.mxu0 %v784
        %v956 = vpop.f32.mrf.mxu0
        %v957 = vadd.f32 0.0, %v956
        %v958 = vpop.f32.mrf.mxu0
        %v959 = vadd.f32 0.0, %v958
        %960 = vmatmul.bf16.gmra.mxu0 %v786
        %v961 = vpop.f32.mrf.mxu0
        %v962 = vadd.f32 0.0, %v961
        %v963 = vpop.f32.mrf.mxu0
        %v964 = vadd.f32 0.0, %v963
        %965 = vmatmul.bf16.gmra.mxu0 %v788
        %v966 = vpop.f32.mrf.mxu0
        %v967 = vadd.f32 0.0, %v966
        %v968 = vpop.f32.mrf.mxu0
        %v969 = vadd.f32 0.0, %v968
        %970 = vmatmul.bf16.gmra.mxu0 %v790
        %v971 = vpop.f32.mrf.mxu0
        %v972 = vadd.f32 0.0, %v971
        %v973 = vpop.f32.mrf.mxu0
        %v974 = vadd.f32 0.0, %v973
        %975 = vmatmul.bf16.gmra.mxu0 %v792
        %v976 = vpop.f32.mrf.mxu0
        %v977 = vadd.f32 0.0, %v976
        %v978 = vpop.f32.mrf.mxu0
        %v979 = vadd.f32 0.0, %v978
        %980 = vmatmul.bf16.gmra.mxu0 %v794
        %v981 = vpop.f32.mrf.mxu0
        %v982 = vadd.f32 0.0, %v981
        %v983 = vpop.f32.mrf.mxu0
        %v984 = vadd.f32 0.0, %v983
        %985 = vmatmul.bf16.gmra.mxu0 %v796
        %v986 = vpop.f32.mrf.mxu0
        %v987 = vadd.f32 0.0, %v986
        %v988 = vpop.f32.mrf.mxu0
        %v989 = vadd.f32 0.0, %v988
        %990 = vmatmul.bf16.gmra.mxu0 %v798
        %v991 = vpop.f32.mrf.mxu0
        %v992 = vadd.f32 0.0, %v991
        %v993 = vpop.f32.mrf.mxu0
        %v994 = vadd.f32 0.0, %v993
        %995 = vdwg.mxu0
        %v996 = vadd.f32 %v660, %v898
        %v997 = vadd.f32 %v714, %v952
        %v998 = vadd.f32 %v662, %v900
        %v999 = vadd.f32 %v716, %v954
        %v1000 = vadd.f32 %v665, %v903
        %v1001 = vadd.f32 %v719, %v957
        %v1002 = vadd.f32 %v667, %v905
        %v1003 = vadd.f32 %v721, %v959
        %v1004 = vadd.f32 %v670, %v908
        %v1005 = vadd.f32 %v724, %v962
        %v1006 = vadd.f32 %v672, %v910
        %v1007 = vadd.f32 %v726, %v964
        %v1008 = vadd.f32 %v675, %v913
        %v1009 = vadd.f32 %v729, %v967
        %v1010 = vadd.f32 %v677, %v915
        %v1011 = vadd.f32 %v731, %v969
        %v1012 = vadd.f32 %v680, %v918
        %v1013 = vadd.f32 %v734, %v972
        %v1014 = vadd.f32 %v682, %v920
        %v1015 = vadd.f32 %v736, %v974
        %v1016 = vadd.f32 %v685, %v923
        %v1017 = vadd.f32 %v739, %v977
        %v1018 = vadd.f32 %v687, %v925
        %v1019 = vadd.f32 %v741, %v979
        %v1020 = vadd.f32 %v690, %v928
        %v1021 = vadd.f32 %v744, %v982
        %v1022 = vadd.f32 %v692, %v930
        %v1023 = vadd.f32 %v746, %v984
        %v1024 = vadd.f32 %v695, %v933
        %v1025 = vadd.f32 %v749, %v987
        %v1026 = vadd.f32 %v697, %v935
        %v1027 = vadd.f32 %v751, %v989
        %v1028 = vadd.f32 %v700, %v938
        %v1029 = vadd.f32 %v754, %v992
        %v1030 = vadd.f32 %v702, %v940
        %v1031 = vadd.f32 %v756, %v994
        %v1032 = vld [vmem:[%s186 + $0x8] sm:$0xe]
        %v1033 = vld [vmem:[%s186 + $0xc] sm:$0xf]
        %v1034 = vld [vmem:[%s186 + $0x10] sm:$0xf]
        %v1035 = vld [vmem:[%s186 + $0x14] sm:$0xf]
        %v1036 = vld [vmem:[%s186 + $0x18] sm:$0xf]
        %v1037 = vld [vmem:[%s186 + $0x1c] sm:$0xf]
        %v1038 = vld [vmem:[%s186 + $0x20] sm:$0xf]
        %v1039 = vld [vmem:[%s186 + $0x24] sm:$0xf]
        %v1040 = vld [vmem:[%s186 + $0x28] sm:$0xf]
        %v1041 = vld [vmem:[%s186 + $0x2c] sm:$0xf]
        %v1042 = vld [vmem:[%s186 + $0x30] sm:$0xf]
        %v1043 = vld [vmem:[%s186 + $0x34] sm:$0xf]
        %v1044 = vld [vmem:[%s186 + $0x38] sm:$0xf]
        %v1045 = vld [vmem:[%s186 + $0x3c] sm:$0xf]
        %v1046 = vld [vmem:[%s186 + $0x40] sm:$0xf]
        %v1047 = vld [vmem:[%s186 + $0x44] sm:$0xf]
        %v1048 = vld [vmem:[%s186 + $0x48] sm:$0xf]
        %v1049 = vld [vmem:[%s186 + $0x4c] sm:$0xf]
        %v1050 = vld [vmem:[%s186 + $0x50] sm:$0x1]
        %s1051 = scalar_lea.vmem [#allocation2], 384
        %v1052 = vld [vmem:[%s1051] sm:$0xff]
        %v1053 = vld [vmem:[%s1051 + $0x8] sm:$0xff]
        %v1054 = vld [vmem:[%s1051 + $0x10] sm:$0xff]
        %v1055 = vld [vmem:[%s1051 + $0x18] sm:$0xff]
        %v1056 = vld [vmem:[%s1051 + $0x20] sm:$0xff]
        %v1057 = vld [vmem:[%s1051 + $0x28] sm:$0xff]
        %v1058 = vld [vmem:[%s1051 + $0x30] sm:$0xff]
        %v1059 = vld [vmem:[%s1051 + $0x38] sm:$0xff]
        %v1060 = vld [vmem:[%s1051 + $0x40] sm:$0xff]
        %v1061 = vld [vmem:[%s1051 + $0x48] sm:$0xff]
        %v1062 = vld [vmem:[%s1051 + $0x50] sm:$0xff]
        %v1063 = vld [vmem:[%s1051 + $0x58] sm:$0xff]
        %v1064 = vld [vmem:[%s1051 + $0x60] sm:$0xff]
        %v1065 = vld [vmem:[%s1051 + $0x68] sm:$0xff]
        %v1066 = vld [vmem:[%s1051 + $0x70] sm:$0xff]
        %v1067 = vld [vmem:[%s1051 + $0x78] sm:$0xff]
        %v1087 = vunpack.c.l.b16 %v1032
        %v1088 = vunpack.c.l.b16 %v1033
        %v1089 = vunpack.c.l.b16 %v1034
        %v1090 = vunpack.c.l.b16 %v1035
        %v1091 = vunpack.c.l.b16 %v1036
        %v1092 = vunpack.c.l.b16 %v1037
        %v1093 = vunpack.c.l.b16 %v1038
        %v1094 = vunpack.c.l.b16 %v1039
        %v1095 = vunpack.c.l.b16 %v1040
        %v1096 = vunpack.c.l.b16 %v1041
        %v1097 = vunpack.c.l.b16 %v1042
        %v1098 = vunpack.c.l.b16 %v1043
        %v1099 = vunpack.c.l.b16 %v1044
        %v1100 = vunpack.c.l.b16 %v1045
        %v1101 = vunpack.c.l.b16 %v1046
        %v1102 = vunpack.c.l.b16 %v1047
        %v1103 = vunpack.c.l.b16 %v1048
        %v1104 = vunpack.c.l.b16 %v1049
        %v1105 = vunpack.c.l.b16 %v1050
        %v1106 = vpack.c.b16 %v1088, %v1087
        %v1107 = vpack.c.b16 %v1090, %v1089
        %v1108 = vpack.c.b16 %v1092, %v1091
        %v1109 = vpack.c.b16 %v1094, %v1093
        %v1110 = vpack.c.b16 %v1096, %v1095
        %v1111 = vpack.c.b16 %v1098, %v1097
        %v1112 = vpack.c.b16 %v1100, %v1099
        %v1113 = vpack.c.b16 %v1102, %v1101
        %v1114 = vpack.c.b16 %v1104, %v1103
        %v1115 = vpack.c.b16 %v1105, %v1105
        %v1116 = vrot.slane %v1106, 1
        %v1117 = vrot.slane %v1107, 1
        %v1118 = vsel %vm779, %v1116, %v1117
        %v1119 = vrot.slane %v1108, 1
        %v1120 = vsel %vm779, %v1117, %v1119
        %v1121 = vrot.slane %v1109, 1
        %v1122 = vsel %vm779, %v1119, %v1121
        %v1123 = vrot.slane %v1110, 1
        %v1124 = vsel %vm779, %v1121, %v1123
        %v1125 = vrot.slane %v1111, 1
        %v1126 = vsel %vm779, %v1123, %v1125
        %v1127 = vrot.slane %v1112, 1
        %v1128 = vsel %vm779, %v1125, %v1127
        %v1129 = vrot.slane %v1113, 1
        %v1130 = vsel %vm779, %v1127, %v1129
        %v1131 = vrot.slane %v1114, 1
        %v1132 = vsel %vm779, %v1129, %v1131
        %v1133 = vrot.slane %v1115, 1
        %v1134 = vsel %vm779, %v1131, %v1133
        %v1160 = vunpack.c.l.b16 %v1052
        %v1161 = vunpack.c.h.b16 %v1052
        %v1162 = vunpack.c.l.b16 %v1053
        %v1163 = vunpack.c.h.b16 %v1053
        %v1164 = vunpack.c.l.b16 %v1054
        %v1165 = vunpack.c.h.b16 %v1054
        %v1166 = vunpack.c.l.b16 %v1055
        %v1167 = vunpack.c.h.b16 %v1055
        %v1168 = vunpack.c.l.b16 %v1056
        %v1169 = vunpack.c.h.b16 %v1056
        %v1170 = vunpack.c.l.b16 %v1057
        %v1171 = vunpack.c.h.b16 %v1057
        %v1172 = vunpack.c.l.b16 %v1058
        %v1173 = vunpack.c.h.b16 %v1058
        %v1174 = vunpack.c.l.b16 %v1059
        %v1175 = vunpack.c.h.b16 %v1059
        %v1176 = vunpack.c.l.b16 %v1060
        %v1177 = vunpack.c.h.b16 %v1060
        %v1178 = vunpack.c.l.b16 %v1061
        %v1179 = vunpack.c.h.b16 %v1061
        %v1180 = vunpack.c.l.b16 %v1062
        %v1181 = vunpack.c.h.b16 %v1062
        %v1182 = vunpack.c.l.b16 %v1063
        %v1183 = vunpack.c.h.b16 %v1063
        %v1184 = vunpack.c.l.b16 %v1064
        %v1185 = vunpack.c.h.b16 %v1064
        %v1186 = vunpack.c.l.b16 %v1065
        %v1187 = vunpack.c.h.b16 %v1065
        %v1188 = vunpack.c.l.b16 %v1066
        %v1189 = vunpack.c.h.b16 %v1066
        %v1190 = vunpack.c.l.b16 %v1067
        %v1191 = vunpack.c.h.b16 %v1067
        %v1192 = vpack.c.b16 %v1162, %v1160
        %v1193 = vpack.c.b16 %v1163, %v1161
        %v1194 = vpack.c.b16 %v1166, %v1164
        %v1195 = vpack.c.b16 %v1167, %v1165
        %v1196 = vpack.c.b16 %v1170, %v1168
        %v1197 = vpack.c.b16 %v1171, %v1169
        %v1198 = vpack.c.b16 %v1174, %v1172
        %v1199 = vpack.c.b16 %v1175, %v1173
        %v1200 = vpack.c.b16 %v1178, %v1176
        %v1201 = vpack.c.b16 %v1179, %v1177
        %v1202 = vpack.c.b16 %v1182, %v1180
        %v1203 = vpack.c.b16 %v1183, %v1181
        %v1204 = vpack.c.b16 %v1186, %v1184
        %v1205 = vpack.c.b16 %v1187, %v1185
        %v1206 = vpack.c.b16 %v1190, %v1188
        %v1207 = vpack.c.b16 %v1191, %v1189
        %1224 = vmatpush.bf16.msra.mxu0 %v1206
        %1225 = vmatpush.bf16.msra.mxu0 %v1204
        %1226 = vmatpush.bf16.msra.mxu0 %v1202
        %1227 = vmatpush.bf16.msra.mxu0 %v1200
        %1228 = vmatpush.bf16.msra.mxu0 %v1198
        %1229 = vmatpush.bf16.msra.mxu0 %v1196
        %1230 = vmatpush.bf16.msra.mxu0 %v1194
        %1231 = vmatpush.bf16.msra.mxu0 %v1192
        %1232 = vmatmul.bf16.gmra.mxu0 %v1118
        %v1233 = vpop.f32.mrf.mxu0
        %v1234 = vadd.f32 0.0, %v1233
        %v1235 = vpop.f32.mrf.mxu0
        %v1236 = vadd.f32 0.0, %v1235
        %1237 = vmatmul.bf16.gmra.mxu0 %v1120
        %v1238 = vpop.f32.mrf.mxu0
        %v1239 = vadd.f32 0.0, %v1238
        %v1240 = vpop.f32.mrf.mxu0
        %v1241 = vadd.f32 0.0, %v1240
        %1242 = vmatmul.bf16.gmra.mxu0 %v1122
        %v1243 = vpop.f32.mrf.mxu0
        %v1244 = vadd.f32 0.0, %v1243
        %v1245 = vpop.f32.mrf.mxu0
        %v1246 = vadd.f32 0.0, %v1245
        %1247 = vmatmul.bf16.gmra.mxu0 %v1124
        %v1248 = vpop.f32.mrf.mxu0
        %v1249 = vadd.f32 0.0, %v1248
        %v1250 = vpop.f32.mrf.mxu0
        %v1251 = vadd.f32 0.0, %v1250
        %1252 = vmatmul.bf16.gmra.mxu0 %v1126
        %v1253 = vpop.f32.mrf.mxu0
        %v1254 = vadd.f32 0.0, %v1253
        %v1255 = vpop.f32.mrf.mxu0
        %v1256 = vadd.f32 0.0, %v1255
        %1257 = vmatmul.bf16.gmra.mxu0 %v1128
        %v1258 = vpop.f32.mrf.mxu0
        %v1259 = vadd.f32 0.0, %v1258
        %v1260 = vpop.f32.mrf.mxu0
        %v1261 = vadd.f32 0.0, %v1260
        %1262 = vmatmul.bf16.gmra.mxu0 %v1130
        %v1263 = vpop.f32.mrf.mxu0
        %v1264 = vadd.f32 0.0, %v1263
        %v1265 = vpop.f32.mrf.mxu0
        %v1266 = vadd.f32 0.0, %v1265
        %1267 = vmatmul.bf16.gmra.mxu0 %v1132
        %v1268 = vpop.f32.mrf.mxu0
        %v1269 = vadd.f32 0.0, %v1268
        %v1270 = vpop.f32.mrf.mxu0
        %v1271 = vadd.f32 0.0, %v1270
        %1272 = vmatmul.bf16.gmra.mxu0 %v1134
        %v1273 = vpop.f32.mrf.mxu0
        %v1274 = vadd.f32 0.0, %v1273
        %v1275 = vpop.f32.mrf.mxu0
        %v1276 = vadd.f32 0.0, %v1275
        %1277 = vdwg.mxu0
        %1278 = vmatpush.bf16.msra.mxu0 %v1207
        %1279 = vmatpush.bf16.msra.mxu0 %v1205
        %1280 = vmatpush.bf16.msra.mxu0 %v1203
        %1281 = vmatpush.bf16.msra.mxu0 %v1201
        %1282 = vmatpush.bf16.msra.mxu0 %v1199
        %1283 = vmatpush.bf16.msra.mxu0 %v1197
        %1284 = vmatpush.bf16.msra.mxu0 %v1195
        %1285 = vmatpush.bf16.msra.mxu0 %v1193
        %1286 = vmatmul.bf16.gmra.mxu0 %v1118
        %v1287 = vpop.f32.mrf.mxu0
        %v1288 = vadd.f32 0.0, %v1287
        %v1289 = vpop.f32.mrf.mxu0
        %v1290 = vadd.f32 0.0, %v1289
        %1291 = vmatmul.bf16.gmra.mxu0 %v1120
        %v1292 = vpop.f32.mrf.mxu0
        %v1293 = vadd.f32 0.0, %v1292
        %v1294 = vpop.f32.mrf.mxu0
        %v1295 = vadd.f32 0.0, %v1294
        %1296 = vmatmul.bf16.gmra.mxu0 %v1122
        %v1297 = vpop.f32.mrf.mxu0
        %v1298 = vadd.f32 0.0, %v1297
        %v1299 = vpop.f32.mrf.mxu0
        %v1300 = vadd.f32 0.0, %v1299
        %1301 = vmatmul.bf16.gmra.mxu0 %v1124
        %v1302 = vpop.f32.mrf.mxu0
        %v1303 = vadd.f32 0.0, %v1302
        %v1304 = vpop.f32.mrf.mxu0
        %v1305 = vadd.f32 0.0, %v1304
        %1306 = vmatmul.bf16.gmra.mxu0 %v1126
        %v1307 = vpop.f32.mrf.mxu0
        %v1308 = vadd.f32 0.0, %v1307
        %v1309 = vpop.f32.mrf.mxu0
        %v1310 = vadd.f32 0.0, %v1309
        %1311 = vmatmul.bf16.gmra.mxu0 %v1128
        %v1312 = vpop.f32.mrf.mxu0
        %v1313 = vadd.f32 0.0, %v1312
        %v1314 = vpop.f32.mrf.mxu0
        %v1315 = vadd.f32 0.0, %v1314
        %1316 = vmatmul.bf16.gmra.mxu0 %v1130
        %v1317 = vpop.f32.mrf.mxu0
        %v1318 = vadd.f32 0.0, %v1317
        %v1319 = vpop.f32.mrf.mxu0
        %v1320 = vadd.f32 0.0, %v1319
        %1321 = vmatmul.bf16.gmra.mxu0 %v1132
        %v1322 = vpop.f32.mrf.mxu0
        %v1323 = vadd.f32 0.0, %v1322
        %v1324 = vpop.f32.mrf.mxu0
        %v1325 = vadd.f32 0.0, %v1324
        %1326 = vmatmul.bf16.gmra.mxu0 %v1134
        %v1327 = vpop.f32.mrf.mxu0
        %v1328 = vadd.f32 0.0, %v1327
        %v1329 = vpop.f32.mrf.mxu0
        %v1330 = vadd.f32 0.0, %v1329
        %1331 = vdwg.mxu0
        %v1332 = vadd.f32 %v996, %v1234
        %v1333 = vadd.f32 %v997, %v1288
        %v1334 = vadd.f32 %v998, %v1236
        %v1335 = vadd.f32 %v999, %v1290
        %v1336 = vadd.f32 %v1000, %v1239
        %v1337 = vadd.f32 %v1001, %v1293
        %v1338 = vadd.f32 %v1002, %v1241
        %v1339 = vadd.f32 %v1003, %v1295
        %v1340 = vadd.f32 %v1004, %v1244
        %v1341 = vadd.f32 %v1005, %v1298
        %v1342 = vadd.f32 %v1006, %v1246
        %v1343 = vadd.f32 %v1007, %v1300
        %v1344 = vadd.f32 %v1008, %v1249
        %v1345 = vadd.f32 %v1009, %v1303
        %v1346 = vadd.f32 %v1010, %v1251
        %v1347 = vadd.f32 %v1011, %v1305
        %v1348 = vadd.f32 %v1012, %v1254
        %v1349 = vadd.f32 %v1013, %v1308
        %v1350 = vadd.f32 %v1014, %v1256
        %v1351 = vadd.f32 %v1015, %v1310
        %v1352 = vadd.f32 %v1016, %v1259
        %v1353 = vadd.f32 %v1017, %v1313
        %v1354 = vadd.f32 %v1018, %v1261
        %v1355 = vadd.f32 %v1019, %v1315
        %v1356 = vadd.f32 %v1020, %v1264
        %v1357 = vadd.f32 %v1021, %v1318
        %v1358 = vadd.f32 %v1022, %v1266
        %v1359 = vadd.f32 %v1023, %v1320
        %v1360 = vadd.f32 %v1024, %v1269
        %v1361 = vadd.f32 %v1025, %v1323
        %v1362 = vadd.f32 %v1026, %v1271
        %v1363 = vadd.f32 %v1027, %v1325
        %v1364 = vadd.f32 %v1028, %v1274
        %v1365 = vadd.f32 %v1029, %v1328
        %v1366 = vadd.f32 %v1030, %v1276
        %v1367 = vadd.f32 %v1031, %v1330
        %v1368 = vld [vmem:[%s186 + $0x50] sm:$0x3]
        %s1369 = scalar_lea.vmem [#allocation2], 512
        %v1370 = vld [vmem:[%s1369] sm:$0xff]
        %v1371 = vld [vmem:[%s1369 + $0x8] sm:$0xff]
        %v1372 = vld [vmem:[%s1369 + $0x10] sm:$0xff]
        %v1373 = vld [vmem:[%s1369 + $0x18] sm:$0xff]
        %v1374 = vld [vmem:[%s1369 + $0x20] sm:$0xff]
        %v1375 = vld [vmem:[%s1369 + $0x28] sm:$0xff]
        %v1376 = vld [vmem:[%s1369 + $0x30] sm:$0xff]
        %v1377 = vld [vmem:[%s1369 + $0x38] sm:$0xff]
        %v1378 = vld [vmem:[%s1369 + $0x40] sm:$0xff]
        %v1379 = vld [vmem:[%s1369 + $0x48] sm:$0xff]
        %v1380 = vld [vmem:[%s1369 + $0x50] sm:$0xff]
        %v1381 = vld [vmem:[%s1369 + $0x58] sm:$0xff]
        %v1382 = vld [vmem:[%s1369 + $0x60] sm:$0xff]
        %v1383 = vld [vmem:[%s1369 + $0x68] sm:$0xff]
        %v1384 = vld [vmem:[%s1369 + $0x70] sm:$0xff]
        %v1385 = vld [vmem:[%s1369 + $0x78] sm:$0xff]
        %v1387 = vunpack.c.l.b16 %v1368
        %v1388 = vpack.c.b16 %v1387, %v1387
        %vm1389 = vsmask.f32 6400
        %v1391 = vshrl.u32 %v1106, 16
        %v1393 = vrot.slane %v1391, 1
        %v1394 = vshll.u32 %v1106, 16
        %v1396 = vrot.slane %v1394, 2
        %v1397 = vor.u32 %v1393, %v1396
        %v1399 = vshrl.u32 %v1107, 16
        %v1401 = vrot.slane %v1399, 1
        %v1402 = vshll.u32 %v1107, 16
        %v1404 = vrot.slane %v1402, 2
        %v1405 = vor.u32 %v1401, %v1404
        %v1406 = vsel %vm1389, %v1397, %v1405
        %v1408 = vshrl.u32 %v1108, 16
        %v1410 = vrot.slane %v1408, 1
        %v1411 = vshll.u32 %v1108, 16
        %v1413 = vrot.slane %v1411, 2
        %v1414 = vor.u32 %v1410, %v1413
        %v1415 = vsel %vm1389, %v1405, %v1414
        %v1417 = vshrl.u32 %v1109, 16
        %v1419 = vrot.slane %v1417, 1
        %v1420 = vshll.u32 %v1109, 16
        %v1422 = vrot.slane %v1420, 2
        %v1423 = vor.u32 %v1419, %v1422
        %v1424 = vsel %vm1389, %v1414, %v1423
        %v1426 = vshrl.u32 %v1110, 16
        %v1428 = vrot.slane %v1426, 1
        %v1429 = vshll.u32 %v1110, 16
        %v1431 = vrot.slane %v1429, 2
        %v1432 = vor.u32 %v1428, %v1431
        %v1433 = vsel %vm1389, %v1423, %v1432
        %v1435 = vshrl.u32 %v1111, 16
        %v1437 = vrot.slane %v1435, 1
        %v1438 = vshll.u32 %v1111, 16
        %v1440 = vrot.slane %v1438, 2
        %v1441 = vor.u32 %v1437, %v1440
        %v1442 = vsel %vm1389, %v1432, %v1441
        %v1444 = vshrl.u32 %v1112, 16
        %v1446 = vrot.slane %v1444, 1
        %v1447 = vshll.u32 %v1112, 16
        %v1449 = vrot.slane %v1447, 2
        %v1450 = vor.u32 %v1446, %v1449
        %v1451 = vsel %vm1389, %v1441, %v1450
        %v1453 = vshrl.u32 %v1113, 16
        %v1455 = vrot.slane %v1453, 1
        %v1456 = vshll.u32 %v1113, 16
        %v1458 = vrot.slane %v1456, 2
        %v1459 = vor.u32 %v1455, %v1458
        %v1460 = vsel %vm1389, %v1450, %v1459
        %v1462 = vshrl.u32 %v1114, 16
        %v1464 = vrot.slane %v1462, 1
        %v1465 = vshll.u32 %v1114, 16
        %v1467 = vrot.slane %v1465, 2
        %v1468 = vor.u32 %v1464, %v1467
        %v1469 = vsel %vm1389, %v1459, %v1468
        %v1471 = vshrl.u32 %v1388, 16
        %v1473 = vrot.slane %v1471, 1
        %v1474 = vshll.u32 %v1388, 16
        %v1476 = vrot.slane %v1474, 2
        %v1477 = vor.u32 %v1473, %v1476
        %v1478 = vsel %vm1389, %v1468, %v1477
        %v1504 = vunpack.c.l.b16 %v1370
        %v1505 = vunpack.c.h.b16 %v1370
        %v1506 = vunpack.c.l.b16 %v1371
        %v1507 = vunpack.c.h.b16 %v1371
        %v1508 = vunpack.c.l.b16 %v1372
        %v1509 = vunpack.c.h.b16 %v1372
        %v1510 = vunpack.c.l.b16 %v1373
        %v1511 = vunpack.c.h.b16 %v1373
        %v1512 = vunpack.c.l.b16 %v1374
        %v1513 = vunpack.c.h.b16 %v1374
        %v1514 = vunpack.c.l.b16 %v1375
        %v1515 = vunpack.c.h.b16 %v1375
        %v1516 = vunpack.c.l.b16 %v1376
        %v1517 = vunpack.c.h.b16 %v1376
        %v1518 = vunpack.c.l.b16 %v1377
        %v1519 = vunpack.c.h.b16 %v1377
        %v1520 = vunpack.c.l.b16 %v1378
        %v1521 = vunpack.c.h.b16 %v1378
        %v1522 = vunpack.c.l.b16 %v1379
        %v1523 = vunpack.c.h.b16 %v1379
        %v1524 = vunpack.c.l.b16 %v1380
        %v1525 = vunpack.c.h.b16 %v1380
        %v1526 = vunpack.c.l.b16 %v1381
        %v1527 = vunpack.c.h.b16 %v1381
        %v1528 = vunpack.c.l.b16 %v1382
        %v1529 = vunpack.c.h.b16 %v1382
        %v1530 = vunpack.c.l.b16 %v1383
        %v1531 = vunpack.c.h.b16 %v1383
        %v1532 = vunpack.c.l.b16 %v1384
        %v1533 = vunpack.c.h.b16 %v1384
        %v1534 = vunpack.c.l.b16 %v1385
        %v1535 = vunpack.c.h.b16 %v1385
        %v1536 = vpack.c.b16 %v1506, %v1504
        %v1537 = vpack.c.b16 %v1507, %v1505
        %v1538 = vpack.c.b16 %v1510, %v1508
        %v1539 = vpack.c.b16 %v1511, %v1509
        %v1540 = vpack.c.b16 %v1514, %v1512
        %v1541 = vpack.c.b16 %v1515, %v1513
        %v1542 = vpack.c.b16 %v1518, %v1516
        %v1543 = vpack.c.b16 %v1519, %v1517
        %v1544 = vpack.c.b16 %v1522, %v1520
        %v1545 = vpack.c.b16 %v1523, %v1521
        %v1546 = vpack.c.b16 %v1526, %v1524
        %v1547 = vpack.c.b16 %v1527, %v1525
        %v1548 = vpack.c.b16 %v1530, %v1528
        %v1549 = vpack.c.b16 %v1531, %v1529
        %v1550 = vpack.c.b16 %v1534, %v1532
        %v1551 = vpack.c.b16 %v1535, %v1533
        %1568 = vmatpush.bf16.msra.mxu0 %v1550
        %1569 = vmatpush.bf16.msra.mxu0 %v1548
        %1570 = vmatpush.bf16.msra.mxu0 %v1546
        %1571 = vmatpush.bf16.msra.mxu0 %v1544
        %1572 = vmatpush.bf16.msra.mxu0 %v1542
        %1573 = vmatpush.bf16.msra.mxu0 %v1540
        %1574 = vmatpush.bf16.msra.mxu0 %v1538
        %1575 = vmatpush.bf16.msra.mxu0 %v1536
        %1576 = vmatmul.bf16.gmra.mxu0 %v1406
        %v1577 = vpop.f32.mrf.mxu0
        %v1578 = vadd.f32 0.0, %v1577
        %v1579 = vpop.f32.mrf.mxu0
        %v1580 = vadd.f32 0.0, %v1579
        %1581 = vmatmul.bf16.gmra.mxu0 %v1415
        %v1582 = vpop.f32.mrf.mxu0
        %v1583 = vadd.f32 0.0, %v1582
        %v1584 = vpop.f32.mrf.mxu0
        %v1585 = vadd.f32 0.0, %v1584
        %1586 = vmatmul.bf16.gmra.mxu0 %v1424
        %v1587 = vpop.f32.mrf.mxu0
        %v1588 = vadd.f32 0.0, %v1587
        %v1589 = vpop.f32.mrf.mxu0
        %v1590 = vadd.f32 0.0, %v1589
        %1591 = vmatmul.bf16.gmra.mxu0 %v1433
        %v1592 = vpop.f32.mrf.mxu0
        %v1593 = vadd.f32 0.0, %v1592
        %v1594 = vpop.f32.mrf.mxu0
        %v1595 = vadd.f32 0.0, %v1594
        %1596 = vmatmul.bf16.gmra.mxu0 %v1442
        %v1597 = vpop.f32.mrf.mxu0
        %v1598 = vadd.f32 0.0, %v1597
        %v1599 = vpop.f32.mrf.mxu0
        %v1600 = vadd.f32 0.0, %v1599
        %1601 = vmatmul.bf16.gmra.mxu0 %v1451
        %v1602 = vpop.f32.mrf.mxu0
        %v1603 = vadd.f32 0.0, %v1602
        %v1604 = vpop.f32.mrf.mxu0
        %v1605 = vadd.f32 0.0, %v1604
        %1606 = vmatmul.bf16.gmra.mxu0 %v1460
        %v1607 = vpop.f32.mrf.mxu0
        %v1608 = vadd.f32 0.0, %v1607
        %v1609 = vpop.f32.mrf.mxu0
        %v1610 = vadd.f32 0.0, %v1609
        %1611 = vmatmul.bf16.gmra.mxu0 %v1469
        %v1612 = vpop.f32.mrf.mxu0
        %v1613 = vadd.f32 0.0, %v1612
        %v1614 = vpop.f32.mrf.mxu0
        %v1615 = vadd.f32 0.0, %v1614
        %1616 = vmatmul.bf16.gmra.mxu0 %v1478
        %v1617 = vpop.f32.mrf.mxu0
        %v1618 = vadd.f32 0.0, %v1617
        %v1619 = vpop.f32.mrf.mxu0
        %v1620 = vadd.f32 0.0, %v1619
        %1621 = vdwg.mxu0
        %1622 = vmatpush.bf16.msra.mxu0 %v1551
        %1623 = vmatpush.bf16.msra.mxu0 %v1549
        %1624 = vmatpush.bf16.msra.mxu0 %v1547
        %1625 = vmatpush.bf16.msra.mxu0 %v1545
        %1626 = vmatpush.bf16.msra.mxu0 %v1543
        %1627 = vmatpush.bf16.msra.mxu0 %v1541
        %1628 = vmatpush.bf16.msra.mxu0 %v1539
        %1629 = vmatpush.bf16.msra.mxu0 %v1537
        %1630 = vmatmul.bf16.gmra.mxu0 %v1406
        %v1631 = vpop.f32.mrf.mxu0
        %v1632 = vadd.f32 0.0, %v1631
        %v1633 = vpop.f32.mrf.mxu0
        %v1634 = vadd.f32 0.0, %v1633
        %1635 = vmatmul.bf16.gmra.mxu0 %v1415
        %v1636 = vpop.f32.mrf.mxu0
        %v1637 = vadd.f32 0.0, %v1636
        %v1638 = vpop.f32.mrf.mxu0
        %v1639 = vadd.f32 0.0, %v1638
        %1640 = vmatmul.bf16.gmra.mxu0 %v1424
        %v1641 = vpop.f32.mrf.mxu0
        %v1642 = vadd.f32 0.0, %v1641
        %v1643 = vpop.f32.mrf.mxu0
        %v1644 = vadd.f32 0.0, %v1643
        %1645 = vmatmul.bf16.gmra.mxu0 %v1433
        %v1646 = vpop.f32.mrf.mxu0
        %v1647 = vadd.f32 0.0, %v1646
        %v1648 = vpop.f32.mrf.mxu0
        %v1649 = vadd.f32 0.0, %v1648
        %1650 = vmatmul.bf16.gmra.mxu0 %v1442
        %v1651 = vpop.f32.mrf.mxu0
        %v1652 = vadd.f32 0.0, %v1651
        %v1653 = vpop.f32.mrf.mxu0
        %v1654 = vadd.f32 0.0, %v1653
        %1655 = vmatmul.bf16.gmra.mxu0 %v1451
        %v1656 = vpop.f32.mrf.mxu0
        %v1657 = vadd.f32 0.0, %v1656
        %v1658 = vpop.f32.mrf.mxu0
        %v1659 = vadd.f32 0.0, %v1658
        %1660 = vmatmul.bf16.gmra.mxu0 %v1460
        %v1661 = vpop.f32.mrf.mxu0
        %v1662 = vadd.f32 0.0, %v1661
        %v1663 = vpop.f32.mrf.mxu0
        %v1664 = vadd.f32 0.0, %v1663
        %1665 = vmatmul.bf16.gmra.mxu0 %v1469
        %v1666 = vpop.f32.mrf.mxu0
        %v1667 = vadd.f32 0.0, %v1666
        %v1668 = vpop.f32.mrf.mxu0
        %v1669 = vadd.f32 0.0, %v1668
        %1670 = vmatmul.bf16.gmra.mxu0 %v1478
        %v1671 = vpop.f32.mrf.mxu0
        %v1672 = vadd.f32 0.0, %v1671
        %v1673 = vpop.f32.mrf.mxu0
        %v1674 = vadd.f32 0.0, %v1673
        %1675 = vdwg.mxu0
        %v1676 = vadd.f32 %v1332, %v1578
        %v1677 = vadd.f32 %v1333, %v1632
        %v1678 = vadd.f32 %v1334, %v1580
        %v1679 = vadd.f32 %v1335, %v1634
        %v1680 = vadd.f32 %v1336, %v1583
        %v1681 = vadd.f32 %v1337, %v1637
        %v1682 = vadd.f32 %v1338, %v1585
        %v1683 = vadd.f32 %v1339, %v1639
        %v1684 = vadd.f32 %v1340, %v1588
        %v1685 = vadd.f32 %v1341, %v1642
        %v1686 = vadd.f32 %v1342, %v1590
        %v1687 = vadd.f32 %v1343, %v1644
        %v1688 = vadd.f32 %v1344, %v1593
        %v1689 = vadd.f32 %v1345, %v1647
        %v1690 = vadd.f32 %v1346, %v1595
        %v1691 = vadd.f32 %v1347, %v1649
        %v1692 = vadd.f32 %v1348, %v1598
        %v1693 = vadd.f32 %v1349, %v1652
        %v1694 = vadd.f32 %v1350, %v1600
        %v1695 = vadd.f32 %v1351, %v1654
        %v1696 = vadd.f32 %v1352, %v1603
        %v1697 = vadd.f32 %v1353, %v1657
        %v1698 = vadd.f32 %v1354, %v1605
        %v1699 = vadd.f32 %v1355, %v1659
        %v1700 = vadd.f32 %v1356, %v1608
        %v1701 = vadd.f32 %v1357, %v1662
        %v1702 = vadd.f32 %v1358, %v1610
        %v1703 = vadd.f32 %v1359, %v1664
        %v1704 = vadd.f32 %v1360, %v1613
        %v1705 = vadd.f32 %v1361, %v1667
        %v1706 = vadd.f32 %v1362, %v1615
        %v1707 = vadd.f32 %v1363, %v1669
        %v1708 = vadd.f32 %v1364, %v1618
        %v1709 = vadd.f32 %v1365, %v1672
        %v1710 = vadd.f32 %v1366, %v1620
        %v1711 = vadd.f32 %v1367, %v1674
        %v1712 = vld [vmem:[%s186 + $0x8] sm:$0xc]
        %s1713 = scalar_lea.vmem [#allocation2], 640
        %v1714 = vld [vmem:[%s1713] sm:$0xff]
        %v1715 = vld [vmem:[%s1713 + $0x8] sm:$0xff]
        %v1716 = vld [vmem:[%s1713 + $0x10] sm:$0xff]
        %v1717 = vld [vmem:[%s1713 + $0x18] sm:$0xff]
        %v1718 = vld [vmem:[%s1713 + $0x20] sm:$0xff]
        %v1719 = vld [vmem:[%s1713 + $0x28] sm:$0xff]
        %v1720 = vld [vmem:[%s1713 + $0x30] sm:$0xff]
        %v1721 = vld [vmem:[%s1713 + $0x38] sm:$0xff]
        %v1722 = vld [vmem:[%s1713 + $0x40] sm:$0xff]
        %v1723 = vld [vmem:[%s1713 + $0x48] sm:$0xff]
        %v1724 = vld [vmem:[%s1713 + $0x50] sm:$0xff]
        %v1725 = vld [vmem:[%s1713 + $0x58] sm:$0xff]
        %v1726 = vld [vmem:[%s1713 + $0x60] sm:$0xff]
        %v1727 = vld [vmem:[%s1713 + $0x68] sm:$0xff]
        %v1728 = vld [vmem:[%s1713 + $0x70] sm:$0xff]
        %v1729 = vld [vmem:[%s1713 + $0x78] sm:$0xff]
        %v1731 = vunpack.c.l.b16 %v1712
        %v1732 = vpack.c.b16 %v1088, %v1731
        %vm1733 = vcmask 1045504
        %v1734 = vrot.slane %v1732, 2
        %v1735 = vrot.slane %v1107, 2
        %v1736 = vsel %vm1733, %v1734, %v1735
        %v1737 = vrot.slane %v1108, 2
        %v1738 = vsel %vm1733, %v1735, %v1737
        %v1739 = vrot.slane %v1109, 2
        %v1740 = vsel %vm1733, %v1737, %v1739
        %v1741 = vrot.slane %v1110, 2
        %v1742 = vsel %vm1733, %v1739, %v1741
        %v1743 = vrot.slane %v1111, 2
        %v1744 = vsel %vm1733, %v1741, %v1743
        %v1745 = vrot.slane %v1112, 2
        %v1746 = vsel %vm1733, %v1743, %v1745
        %v1747 = vrot.slane %v1113, 2
        %v1748 = vsel %vm1733, %v1745, %v1747
        %v1749 = vrot.slane %v1114, 2
        %v1750 = vsel %vm1733, %v1747, %v1749
        %v1751 = vrot.slane %v1388, 2
        %v1752 = vsel %vm1733, %v1749, %v1751
        %v1778 = vunpack.c.l.b16 %v1714
        %v1779 = vunpack.c.h.b16 %v1714
        %v1780 = vunpack.c.l.b16 %v1715
        %v1781 = vunpack.c.h.b16 %v1715
        %v1782 = vunpack.c.l.b16 %v1716
        %v1783 = vunpack.c.h.b16 %v1716
        %v1784 = vunpack.c.l.b16 %v1717
        %v1785 = vunpack.c.h.b16 %v1717
        %v1786 = vunpack.c.l.b16 %v1718
        %v1787 = vunpack.c.h.b16 %v1718
        %v1788 = vunpack.c.l.b16 %v1719
        %v1789 = vunpack.c.h.b16 %v1719
        %v1790 = vunpack.c.l.b16 %v1720
        %v1791 = vunpack.c.h.b16 %v1720
        %v1792 = vunpack.c.l.b16 %v1721
        %v1793 = vunpack.c.h.b16 %v1721
        %v1794 = vunpack.c.l.b16 %v1722
        %v1795 = vunpack.c.h.b16 %v1722
        %v1796 = vunpack.c.l.b16 %v1723
        %v1797 = vunpack.c.h.b16 %v1723
        %v1798 = vunpack.c.l.b16 %v1724
        %v1799 = vunpack.c.h.b16 %v1724
        %v1800 = vunpack.c.l.b16 %v1725
        %v1801 = vunpack.c.h.b16 %v1725
        %v1802 = vunpack.c.l.b16 %v1726
        %v1803 = vunpack.c.h.b16 %v1726
        %v1804 = vunpack.c.l.b16 %v1727
        %v1805 = vunpack.c.h.b16 %v1727
        %v1806 = vunpack.c.l.b16 %v1728
        %v1807 = vunpack.c.h.b16 %v1728
        %v1808 = vunpack.c.l.b16 %v1729
        %v1809 = vunpack.c.h.b16 %v1729
        %v1810 = vpack.c.b16 %v1780, %v1778
        %v1811 = vpack.c.b16 %v1781, %v1779
        %v1812 = vpack.c.b16 %v1784, %v1782
        %v1813 = vpack.c.b16 %v1785, %v1783
        %v1814 = vpack.c.b16 %v1788, %v1786
        %v1815 = vpack.c.b16 %v1789, %v1787
        %v1816 = vpack.c.b16 %v1792, %v1790
        %v1817 = vpack.c.b16 %v1793, %v1791
        %v1818 = vpack.c.b16 %v1796, %v1794
        %v1819 = vpack.c.b16 %v1797, %v1795
        %v1820 = vpack.c.b16 %v1800, %v1798
        %v1821 = vpack.c.b16 %v1801, %v1799
        %v1822 = vpack.c.b16 %v1804, %v1802
        %v1823 = vpack.c.b16 %v1805, %v1803
        %v1824 = vpack.c.b16 %v1808, %v1806
        %v1825 = vpack.c.b16 %v1809, %v1807
        %1842 = vmatpush.bf16.msra.mxu0 %v1824
        %1843 = vmatpush.bf16.msra.mxu0 %v1822
        %1844 = vmatpush.bf16.msra.mxu0 %v1820
        %1845 = vmatpush.bf16.msra.mxu0 %v1818
        %1846 = vmatpush.bf16.msra.mxu0 %v1816
        %1847 = vmatpush.bf16.msra.mxu0 %v1814
        %1848 = vmatpush.bf16.msra.mxu0 %v1812
        %1849 = vmatpush.bf16.msra.mxu0 %v1810
        %1850 = vmatmul.bf16.gmra.mxu0 %v1736
        %v1851 = vpop.f32.mrf.mxu0
        %v1852 = vadd.f32 0.0, %v1851
        %v1853 = vpop.f32.mrf.mxu0
        %v1854 = vadd.f32 0.0, %v1853
        %1855 = vmatmul.bf16.gmra.mxu0 %v1738
        %v1856 = vpop.f32.mrf.mxu0
        %v1857 = vadd.f32 0.0, %v1856
        %v1858 = vpop.f32.mrf.mxu0
        %v1859 = vadd.f32 0.0, %v1858
        %1860 = vmatmul.bf16.gmra.mxu0 %v1740
        %v1861 = vpop.f32.mrf.mxu0
        %v1862 = vadd.f32 0.0, %v1861
        %v1863 = vpop.f32.mrf.mxu0
        %v1864 = vadd.f32 0.0, %v1863
        %1865 = vmatmul.bf16.gmra.mxu0 %v1742
        %v1866 = vpop.f32.mrf.mxu0
        %v1867 = vadd.f32 0.0, %v1866
        %v1868 = vpop.f32.mrf.mxu0
        %v1869 = vadd.f32 0.0, %v1868
        %1870 = vmatmul.bf16.gmra.mxu0 %v1744
        %v1871 = vpop.f32.mrf.mxu0
        %v1872 = vadd.f32 0.0, %v1871
        %v1873 = vpop.f32.mrf.mxu0
        %v1874 = vadd.f32 0.0, %v1873
        %1875 = vmatmul.bf16.gmra.mxu0 %v1746
        %v1876 = vpop.f32.mrf.mxu0
        %v1877 = vadd.f32 0.0, %v1876
        %v1878 = vpop.f32.mrf.mxu0
        %v1879 = vadd.f32 0.0, %v1878
        %1880 = vmatmul.bf16.gmra.mxu0 %v1748
        %v1881 = vpop.f32.mrf.mxu0
        %v1882 = vadd.f32 0.0, %v1881
        %v1883 = vpop.f32.mrf.mxu0
        %v1884 = vadd.f32 0.0, %v1883
        %1885 = vmatmul.bf16.gmra.mxu0 %v1750
        %v1886 = vpop.f32.mrf.mxu0
        %v1887 = vadd.f32 0.0, %v1886
        %v1888 = vpop.f32.mrf.mxu0
        %v1889 = vadd.f32 0.0, %v1888
        %1890 = vmatmul.bf16.gmra.mxu0 %v1752
        %v1891 = vpop.f32.mrf.mxu0
        %v1892 = vadd.f32 0.0, %v1891
        %v1893 = vpop.f32.mrf.mxu0
        %v1894 = vadd.f32 0.0, %v1893
        %1895 = vdwg.mxu0
        %1896 = vmatpush.bf16.msra.mxu0 %v1825
        %1897 = vmatpush.bf16.msra.mxu0 %v1823
        %1898 = vmatpush.bf16.msra.mxu0 %v1821
        %1899 = vmatpush.bf16.msra.mxu0 %v1819
        %1900 = vmatpush.bf16.msra.mxu0 %v1817
        %1901 = vmatpush.bf16.msra.mxu0 %v1815
        %1902 = vmatpush.bf16.msra.mxu0 %v1813
        %1903 = vmatpush.bf16.msra.mxu0 %v1811
        %1904 = vmatmul.bf16.gmra.mxu0 %v1736
        %v1905 = vpop.f32.mrf.mxu0
        %v1906 = vadd.f32 0.0, %v1905
        %v1907 = vpop.f32.mrf.mxu0
        %v1908 = vadd.f32 0.0, %v1907
        %1909 = vmatmul.bf16.gmra.mxu0 %v1738
        %v1910 = vpop.f32.mrf.mxu0
        %v1911 = vadd.f32 0.0, %v1910
        %v1912 = vpop.f32.mrf.mxu0
        %v1913 = vadd.f32 0.0, %v1912
        %1914 = vmatmul.bf16.gmra.mxu0 %v1740
        %v1915 = vpop.f32.mrf.mxu0
        %v1916 = vadd.f32 0.0, %v1915
        %v1917 = vpop.f32.mrf.mxu0
        %v1918 = vadd.f32 0.0, %v1917
        %1919 = vmatmul.bf16.gmra.mxu0 %v1742
        %v1920 = vpop.f32.mrf.mxu0
        %v1921 = vadd.f32 0.0, %v1920
        %v1922 = vpop.f32.mrf.mxu0
        %v1923 = vadd.f32 0.0, %v1922
        %1924 = vmatmul.bf16.gmra.mxu0 %v1744
        %v1925 = vpop.f32.mrf.mxu0
        %v1926 = vadd.f32 0.0, %v1925
        %v1927 = vpop.f32.mrf.mxu0
        %v1928 = vadd.f32 0.0, %v1927
        %1929 = vmatmul.bf16.gmra.mxu0 %v1746
        %v1930 = vpop.f32.mrf.mxu0
        %v1931 = vadd.f32 0.0, %v1930
        %v1932 = vpop.f32.mrf.mxu0
        %v1933 = vadd.f32 0.0, %v1932
        %1934 = vmatmul.bf16.gmra.mxu0 %v1748
        %v1935 = vpop.f32.mrf.mxu0
        %v1936 = vadd.f32 0.0, %v1935
        %v1937 = vpop.f32.mrf.mxu0
        %v1938 = vadd.f32 0.0, %v1937
        %1939 = vmatmul.bf16.gmra.mxu0 %v1750
        %v1940 = vpop.f32.mrf.mxu0
        %v1941 = vadd.f32 0.0, %v1940
        %v1942 = vpop.f32.mrf.mxu0
        %v1943 = vadd.f32 0.0, %v1942
        %1944 = vmatmul.bf16.gmra.mxu0 %v1752
        %v1945 = vpop.f32.mrf.mxu0
        %v1946 = vadd.f32 0.0, %v1945
        %v1947 = vpop.f32.mrf.mxu0
        %v1948 = vadd.f32 0.0, %v1947
        %1949 = vdwg.mxu0
        %v1950 = vadd.f32 %v1676, %v1852
        %v1951 = vadd.f32 %v1677, %v1906
        %v1952 = vadd.f32 %v1678, %v1854
        %v1953 = vadd.f32 %v1679, %v1908
        %v1954 = vadd.f32 %v1680, %v1857
        %v1955 = vadd.f32 %v1681, %v1911
        %v1956 = vadd.f32 %v1682, %v1859
        %v1957 = vadd.f32 %v1683, %v1913
        %v1958 = vadd.f32 %v1684, %v1862
        %v1959 = vadd.f32 %v1685, %v1916
        %v1960 = vadd.f32 %v1686, %v1864
        %v1961 = vadd.f32 %v1687, %v1918
        %v1962 = vadd.f32 %v1688, %v1867
        %v1963 = vadd.f32 %v1689, %v1921
        %v1964 = vadd.f32 %v1690, %v1869
        %v1965 = vadd.f32 %v1691, %v1923
        %v1966 = vadd.f32 %v1692, %v1872
        %v1967 = vadd.f32 %v1693, %v1926
        %v1968 = vadd.f32 %v1694, %v1874
        %v1969 = vadd.f32 %v1695, %v1928
        %v1970 = vadd.f32 %v1696, %v1877
        %v1971 = vadd.f32 %v1697, %v1931
        %v1972 = vadd.f32 %v1698, %v1879
        %v1973 = vadd.f32 %v1699, %v1933
        %v1974 = vadd.f32 %v1700, %v1882
        %v1975 = vadd.f32 %v1701, %v1936
        %v1976 = vadd.f32 %v1702, %v1884
        %v1977 = vadd.f32 %v1703, %v1938
        %v1978 = vadd.f32 %v1704, %v1887
        %v1979 = vadd.f32 %v1705, %v1941
        %v1980 = vadd.f32 %v1706, %v1889
        %v1981 = vadd.f32 %v1707, %v1943
        %v1982 = vadd.f32 %v1708, %v1892
        %v1983 = vadd.f32 %v1709, %v1946
        %v1984 = vadd.f32 %v1710, %v1894
        %v1985 = vadd.f32 %v1711, %v1948
        %v1986 = vld [vmem:[%s186 + $0x10] sm:$0xc]
        %v1987 = vld [vmem:[%s186 + $0x14] sm:$0xf]
        %v1988 = vld [vmem:[%s186 + $0x18] sm:$0xf]
        %v1989 = vld [vmem:[%s186 + $0x1c] sm:$0xf]
        %v1990 = vld [vmem:[%s186 + $0x20] sm:$0xf]
        %v1991 = vld [vmem:[%s186 + $0x24] sm:$0xf]
        %v1992 = vld [vmem:[%s186 + $0x28] sm:$0xf]
        %v1993 = vld [vmem:[%s186 + $0x2c] sm:$0xf]
        %v1994 = vld [vmem:[%s186 + $0x30] sm:$0xf]
        %v1995 = vld [vmem:[%s186 + $0x34] sm:$0xf]
        %v1996 = vld [vmem:[%s186 + $0x38] sm:$0xf]
        %v1997 = vld [vmem:[%s186 + $0x3c] sm:$0xf]
        %v1998 = vld [vmem:[%s186 + $0x40] sm:$0xf]
        %v1999 = vld [vmem:[%s186 + $0x44] sm:$0xf]
        %v2000 = vld [vmem:[%s186 + $0x48] sm:$0xf]
        %v2001 = vld [vmem:[%s186 + $0x4c] sm:$0xf]
        %v2002 = vld [vmem:[%s186 + $0x50] sm:$0xf]
        %v2003 = vld [vmem:[%s186 + $0x54] sm:$0xf]
        %v2004 = vld [vmem:[%s186 + $0x58] sm:$0x3]
        %s2005 = scalar_lea.vmem [#allocation2], 768
        %v2006 = vld [vmem:[%s2005] sm:$0xff]
        %v2007 = vld [vmem:[%s2005 + $0x8] sm:$0xff]
        %v2008 = vld [vmem:[%s2005 + $0x10] sm:$0xff]
        %v2009 = vld [vmem:[%s2005 + $0x18] sm:$0xff]
        %v2010 = vld [vmem:[%s2005 + $0x20] sm:$0xff]
        %v2011 = vld [vmem:[%s2005 + $0x28] sm:$0xff]
        %v2012 = vld [vmem:[%s2005 + $0x30] sm:$0xff]
        %v2013 = vld [vmem:[%s2005 + $0x38] sm:$0xff]
        %v2014 = vld [vmem:[%s2005 + $0x40] sm:$0xff]
        %v2015 = vld [vmem:[%s2005 + $0x48] sm:$0xff]
        %v2016 = vld [vmem:[%s2005 + $0x50] sm:$0xff]
        %v2017 = vld [vmem:[%s2005 + $0x58] sm:$0xff]
        %v2018 = vld [vmem:[%s2005 + $0x60] sm:$0xff]
        %v2019 = vld [vmem:[%s2005 + $0x68] sm:$0xff]
        %v2020 = vld [vmem:[%s2005 + $0x70] sm:$0xff]
        %v2021 = vld [vmem:[%s2005 + $0x78] sm:$0xff]
        %v2041 = vunpack.c.l.b16 %v1986
        %v2042 = vunpack.c.l.b16 %v1987
        %v2043 = vunpack.c.l.b16 %v1988
        %v2044 = vunpack.c.l.b16 %v1989
        %v2045 = vunpack.c.l.b16 %v1990
        %v2046 = vunpack.c.l.b16 %v1991
        %v2047 = vunpack.c.l.b16 %v1992
        %v2048 = vunpack.c.l.b16 %v1993
        %v2049 = vunpack.c.l.b16 %v1994
        %v2050 = vunpack.c.l.b16 %v1995
        %v2051 = vunpack.c.l.b16 %v1996
        %v2052 = vunpack.c.l.b16 %v1997
        %v2053 = vunpack.c.l.b16 %v1998
        %v2054 = vunpack.c.l.b16 %v1999
        %v2055 = vunpack.c.l.b16 %v2000
        %v2056 = vunpack.c.l.b16 %v2001
        %v2057 = vunpack.c.l.b16 %v2002
        %v2058 = vunpack.c.l.b16 %v2003
        %v2059 = vunpack.c.l.b16 %v2004
        %v2060 = vpack.c.b16 %v2042, %v2041
        %v2061 = vpack.c.b16 %v2044, %v2043
        %v2062 = vpack.c.b16 %v2046, %v2045
        %v2063 = vpack.c.b16 %v2048, %v2047
        %v2064 = vpack.c.b16 %v2050, %v2049
        %v2065 = vpack.c.b16 %v2052, %v2051
        %v2066 = vpack.c.b16 %v2054, %v2053
        %v2067 = vpack.c.b16 %v2056, %v2055
        %v2068 = vpack.c.b16 %v2058, %v2057
        %v2069 = vpack.c.b16 %v2059, %v2059
        %v2070 = vrot.slane %v2060, 2
        %v2071 = vrot.slane %v2061, 2
        %v2072 = vsel %vm1733, %v2070, %v2071
        %v2073 = vrot.slane %v2062, 2
        %v2074 = vsel %vm1733, %v2071, %v2073
        %v2075 = vrot.slane %v2063, 2
        %v2076 = vsel %vm1733, %v2073, %v2075
        %v2077 = vrot.slane %v2064, 2
        %v2078 = vsel %vm1733, %v2075, %v2077
        %v2079 = vrot.slane %v2065, 2
        %v2080 = vsel %vm1733, %v2077, %v2079
        %v2081 = vrot.slane %v2066, 2
        %v2082 = vsel %vm1733, %v2079, %v2081
        %v2083 = vrot.slane %v2067, 2
        %v2084 = vsel %vm1733, %v2081, %v2083
        %v2085 = vrot.slane %v2068, 2
        %v2086 = vsel %vm1733, %v2083, %v2085
        %v2087 = vrot.slane %v2069, 2
        %v2088 = vsel %vm1733, %v2085, %v2087
        %v2114 = vunpack.c.l.b16 %v2006
        %v2115 = vunpack.c.h.b16 %v2006
        %v2116 = vunpack.c.l.b16 %v2007
        %v2117 = vunpack.c.h.b16 %v2007
        %v2118 = vunpack.c.l.b16 %v2008
        %v2119 = vunpack.c.h.b16 %v2008
        %v2120 = vunpack.c.l.b16 %v2009
        %v2121 = vunpack.c.h.b16 %v2009
        %v2122 = vunpack.c.l.b16 %v2010
        %v2123 = vunpack.c.h.b16 %v2010
        %v2124 = vunpack.c.l.b16 %v2011
        %v2125 = vunpack.c.h.b16 %v2011
        %v2126 = vunpack.c.l.b16 %v2012
        %v2127 = vunpack.c.h.b16 %v2012
        %v2128 = vunpack.c.l.b16 %v2013
        %v2129 = vunpack.c.h.b16 %v2013
        %v2130 = vunpack.c.l.b16 %v2014
        %v2131 = vunpack.c.h.b16 %v2014
        %v2132 = vunpack.c.l.b16 %v2015
        %v2133 = vunpack.c.h.b16 %v2015
        %v2134 = vunpack.c.l.b16 %v2016
        %v2135 = vunpack.c.h.b16 %v2016
        %v2136 = vunpack.c.l.b16 %v2017
        %v2137 = vunpack.c.h.b16 %v2017
        %v2138 = vunpack.c.l.b16 %v2018
        %v2139 = vunpack.c.h.b16 %v2018
        %v2140 = vunpack.c.l.b16 %v2019
        %v2141 = vunpack.c.h.b16 %v2019
        %v2142 = vunpack.c.l.b16 %v2020
        %v2143 = vunpack.c.h.b16 %v2020
        %v2144 = vunpack.c.l.b16 %v2021
        %v2145 = vunpack.c.h.b16 %v2021
        %v2146 = vpack.c.b16 %v2116, %v2114
        %v2147 = vpack.c.b16 %v2117, %v2115
        %v2148 = vpack.c.b16 %v2120, %v2118
        %v2149 = vpack.c.b16 %v2121, %v2119
        %v2150 = vpack.c.b16 %v2124, %v2122
        %v2151 = vpack.c.b16 %v2125, %v2123
        %v2152 = vpack.c.b16 %v2128, %v2126
        %v2153 = vpack.c.b16 %v2129, %v2127
        %v2154 = vpack.c.b16 %v2132, %v2130
        %v2155 = vpack.c.b16 %v2133, %v2131
        %v2156 = vpack.c.b16 %v2136, %v2134
        %v2157 = vpack.c.b16 %v2137, %v2135
        %v2158 = vpack.c.b16 %v2140, %v2138
        %v2159 = vpack.c.b16 %v2141, %v2139
        %v2160 = vpack.c.b16 %v2144, %v2142
        %v2161 = vpack.c.b16 %v2145, %v2143
        %2178 = vmatpush.bf16.msra.mxu0 %v2160
        %2179 = vmatpush.bf16.msra.mxu0 %v2158
        %2180 = vmatpush.bf16.msra.mxu0 %v2156
        %2181 = vmatpush.bf16.msra.mxu0 %v2154
        %2182 = vmatpush.bf16.msra.mxu0 %v2152
        %2183 = vmatpush.bf16.msra.mxu0 %v2150
        %2184 = vmatpush.bf16.msra.mxu0 %v2148
        %2185 = vmatpush.bf16.msra.mxu0 %v2146
        %2186 = vmatmul.bf16.gmra.mxu0 %v2072
        %v2187 = vpop.f32.mrf.mxu0
        %v2188 = vadd.f32 0.0, %v2187
        %v2189 = vpop.f32.mrf.mxu0
        %v2190 = vadd.f32 0.0, %v2189
        %2191 = vmatmul.bf16.gmra.mxu0 %v2074
        %v2192 = vpop.f32.mrf.mxu0
        %v2193 = vadd.f32 0.0, %v2192
        %v2194 = vpop.f32.mrf.mxu0
        %v2195 = vadd.f32 0.0, %v2194
        %2196 = vmatmul.bf16.gmra.mxu0 %v2076
        %v2197 = vpop.f32.mrf.mxu0
        %v2198 = vadd.f32 0.0, %v2197
        %v2199 = vpop.f32.mrf.mxu0
        %v2200 = vadd.f32 0.0, %v2199
        %2201 = vmatmul.bf16.gmra.mxu0 %v2078
        %v2202 = vpop.f32.mrf.mxu0
        %v2203 = vadd.f32 0.0, %v2202
        %v2204 = vpop.f32.mrf.mxu0
        %v2205 = vadd.f32 0.0, %v2204
        %2206 = vmatmul.bf16.gmra.mxu0 %v2080
        %v2207 = vpop.f32.mrf.mxu0
        %v2208 = vadd.f32 0.0, %v2207
        %v2209 = vpop.f32.mrf.mxu0
        %v2210 = vadd.f32 0.0, %v2209
        %2211 = vmatmul.bf16.gmra.mxu0 %v2082
        %v2212 = vpop.f32.mrf.mxu0
        %v2213 = vadd.f32 0.0, %v2212
        %v2214 = vpop.f32.mrf.mxu0
        %v2215 = vadd.f32 0.0, %v2214
        %2216 = vmatmul.bf16.gmra.mxu0 %v2084
        %v2217 = vpop.f32.mrf.mxu0
        %v2218 = vadd.f32 0.0, %v2217
        %v2219 = vpop.f32.mrf.mxu0
        %v2220 = vadd.f32 0.0, %v2219
        %2221 = vmatmul.bf16.gmra.mxu0 %v2086
        %v2222 = vpop.f32.mrf.mxu0
        %v2223 = vadd.f32 0.0, %v2222
        %v2224 = vpop.f32.mrf.mxu0
        %v2225 = vadd.f32 0.0, %v2224
        %2226 = vmatmul.bf16.gmra.mxu0 %v2088
        %v2227 = vpop.f32.mrf.mxu0
        %v2228 = vadd.f32 0.0, %v2227
        %v2229 = vpop.f32.mrf.mxu0
        %v2230 = vadd.f32 0.0, %v2229
        %2231 = vdwg.mxu0
        %2232 = vmatpush.bf16.msra.mxu0 %v2161
        %2233 = vmatpush.bf16.msra.mxu0 %v2159
        %2234 = vmatpush.bf16.msra.mxu0 %v2157
        %2235 = vmatpush.bf16.msra.mxu0 %v2155
        %2236 = vmatpush.bf16.msra.mxu0 %v2153
        %2237 = vmatpush.bf16.msra.mxu0 %v2151
        %2238 = vmatpush.bf16.msra.mxu0 %v2149
        %2239 = vmatpush.bf16.msra.mxu0 %v2147
        %2240 = vmatmul.bf16.gmra.mxu0 %v2072
        %v2241 = vpop.f32.mrf.mxu0
        %v2242 = vadd.f32 0.0, %v2241
        %v2243 = vpop.f32.mrf.mxu0
        %v2244 = vadd.f32 0.0, %v2243
        %2245 = vmatmul.bf16.gmra.mxu0 %v2074
        %v2246 = vpop.f32.mrf.mxu0
        %v2247 = vadd.f32 0.0, %v2246
        %v2248 = vpop.f32.mrf.mxu0
        %v2249 = vadd.f32 0.0, %v2248
        %2250 = vmatmul.bf16.gmra.mxu0 %v2076
        %v2251 = vpop.f32.mrf.mxu0
        %v2252 = vadd.f32 0.0, %v2251
        %v2253 = vpop.f32.mrf.mxu0
        %v2254 = vadd.f32 0.0, %v2253
        %2255 = vmatmul.bf16.gmra.mxu0 %v2078
        %v2256 = vpop.f32.mrf.mxu0
        %v2257 = vadd.f32 0.0, %v2256
        %v2258 = vpop.f32.mrf.mxu0
        %v2259 = vadd.f32 0.0, %v2258
        %2260 = vmatmul.bf16.gmra.mxu0 %v2080
        %v2261 = vpop.f32.mrf.mxu0
        %v2262 = vadd.f32 0.0, %v2261
        %v2263 = vpop.f32.mrf.mxu0
        %v2264 = vadd.f32 0.0, %v2263
        %2265 = vmatmul.bf16.gmra.mxu0 %v2082
        %v2266 = vpop.f32.mrf.mxu0
        %v2267 = vadd.f32 0.0, %v2266
        %v2268 = vpop.f32.mrf.mxu0
        %v2269 = vadd.f32 0.0, %v2268
        %2270 = vmatmul.bf16.gmra.mxu0 %v2084
        %v2271 = vpop.f32.mrf.mxu0
        %v2272 = vadd.f32 0.0, %v2271
        %v2273 = vpop.f32.mrf.mxu0
        %v2274 = vadd.f32 0.0, %v2273
        %2275 = vmatmul.bf16.gmra.mxu0 %v2086
        %v2276 = vpop.f32.mrf.mxu0
        %v2277 = vadd.f32 0.0, %v2276
        %v2278 = vpop.f32.mrf.mxu0
        %v2279 = vadd.f32 0.0, %v2278
        %2280 = vmatmul.bf16.gmra.mxu0 %v2088
        %v2281 = vpop.f32.mrf.mxu0
        %v2282 = vadd.f32 0.0, %v2281
        %v2283 = vpop.f32.mrf.mxu0
        %v2284 = vadd.f32 0.0, %v2283
        %2285 = vdwg.mxu0
        %v2286 = vadd.f32 %v1950, %v2188
        %v2287 = vadd.f32 %v1951, %v2242
        %v2288 = vadd.f32 %v1952, %v2190
        %v2289 = vadd.f32 %v1953, %v2244
        %v2290 = vadd.f32 %v1954, %v2193
        %v2291 = vadd.f32 %v1955, %v2247
        %v2292 = vadd.f32 %v1956, %v2195
        %v2293 = vadd.f32 %v1957, %v2249
        %v2294 = vadd.f32 %v1958, %v2198
        %v2295 = vadd.f32 %v1959, %v2252
        %v2296 = vadd.f32 %v1960, %v2200
        %v2297 = vadd.f32 %v1961, %v2254
        %v2298 = vadd.f32 %v1962, %v2203
        %v2299 = vadd.f32 %v1963, %v2257
        %v2300 = vadd.f32 %v1964, %v2205
        %v2301 = vadd.f32 %v1965, %v2259
        %v2302 = vadd.f32 %v1966, %v2208
        %v2303 = vadd.f32 %v1967, %v2262
        %v2304 = vadd.f32 %v1968, %v2210
        %v2305 = vadd.f32 %v1969, %v2264
        %v2306 = vadd.f32 %v1970, %v2213
        %v2307 = vadd.f32 %v1971, %v2267
        %v2308 = vadd.f32 %v1972, %v2215
        %v2309 = vadd.f32 %v1973, %v2269
        %v2310 = vadd.f32 %v1974, %v2218
        %v2311 = vadd.f32 %v1975, %v2272
        %v2312 = vadd.f32 %v1976, %v2220
        %v2313 = vadd.f32 %v1977, %v2274
        %v2314 = vadd.f32 %v1978, %v2223
        %v2315 = vadd.f32 %v1979, %v2277
        %v2316 = vadd.f32 %v1980, %v2225
        %v2317 = vadd.f32 %v1981, %v2279
        %v2318 = vadd.f32 %v1982, %v2228
        %v2319 = vadd.f32 %v1983, %v2282
        %v2320 = vadd.f32 %v1984, %v2230
        %v2321 = vadd.f32 %v1985, %v2284
        %v2322 = vld [vmem:[%s186 + $0x58] sm:$0x7]
        %s2323 = scalar_lea.vmem [#allocation2], 896
        %v2324 = vld [vmem:[%s2323] sm:$0xff]
        %v2325 = vld [vmem:[%s2323 + $0x8] sm:$0xff]
        %v2326 = vld [vmem:[%s2323 + $0x10] sm:$0xff]
        %v2327 = vld [vmem:[%s2323 + $0x18] sm:$0xff]
        %v2328 = vld [vmem:[%s2323 + $0x20] sm:$0xff]
        %v2329 = vld [vmem:[%s2323 + $0x28] sm:$0xff]
        %v2330 = vld [vmem:[%s2323 + $0x30] sm:$0xff]
        %v2331 = vld [vmem:[%s2323 + $0x38] sm:$0xff]
        %v2332 = vld [vmem:[%s2323 + $0x40] sm:$0xff]
        %v2333 = vld [vmem:[%s2323 + $0x48] sm:$0xff]
        %v2334 = vld [vmem:[%s2323 + $0x50] sm:$0xff]
        %v2335 = vld [vmem:[%s2323 + $0x58] sm:$0xff]
        %v2336 = vld [vmem:[%s2323 + $0x60] sm:$0xff]
        %v2337 = vld [vmem:[%s2323 + $0x68] sm:$0xff]
        %v2338 = vld [vmem:[%s2323 + $0x70] sm:$0xff]
        %v2339 = vld [vmem:[%s2323 + $0x78] sm:$0xff]
        %v2341 = vunpack.c.l.b16 %v2322
        %v2342 = vpack.c.b16 %v2341, %v2341
        %vm2343 = vsmask.f32 5376
        %v2345 = vshrl.u32 %v2060, 16
        %v2347 = vrot.slane %v2345, 2
        %v2348 = vshll.u32 %v2060, 16
        %v2350 = vrot.slane %v2348, 3
        %v2351 = vor.u32 %v2347, %v2350
        %v2353 = vshrl.u32 %v2061, 16
        %v2355 = vrot.slane %v2353, 2
        %v2356 = vshll.u32 %v2061, 16
        %v2358 = vrot.slane %v2356, 3
        %v2359 = vor.u32 %v2355, %v2358
        %v2360 = vsel %vm2343, %v2351, %v2359
        %v2362 = vshrl.u32 %v2062, 16
        %v2364 = vrot.slane %v2362, 2
        %v2365 = vshll.u32 %v2062, 16
        %v2367 = vrot.slane %v2365, 3
        %v2368 = vor.u32 %v2364, %v2367
        %v2369 = vsel %vm2343, %v2359, %v2368
        %v2371 = vshrl.u32 %v2063, 16
        %v2373 = vrot.slane %v2371, 2
        %v2374 = vshll.u32 %v2063, 16
        %v2376 = vrot.slane %v2374, 3
        %v2377 = vor.u32 %v2373, %v2376
        %v2378 = vsel %vm2343, %v2368, %v2377
        %v2380 = vshrl.u32 %v2064, 16
        %v2382 = vrot.slane %v2380, 2
        %v2383 = vshll.u32 %v2064, 16
        %v2385 = vrot.slane %v2383, 3
        %v2386 = vor.u32 %v2382, %v2385
        %v2387 = vsel %vm2343, %v2377, %v2386
        %v2389 = vshrl.u32 %v2065, 16
        %v2391 = vrot.slane %v2389, 2
        %v2392 = vshll.u32 %v2065, 16
        %v2394 = vrot.slane %v2392, 3
        %v2395 = vor.u32 %v2391, %v2394
        %v2396 = vsel %vm2343, %v2386, %v2395
        %v2398 = vshrl.u32 %v2066, 16
        %v2400 = vrot.slane %v2398, 2
        %v2401 = vshll.u32 %v2066, 16
        %v2403 = vrot.slane %v2401, 3
        %v2404 = vor.u32 %v2400, %v2403
        %v2405 = vsel %vm2343, %v2395, %v2404
        %v2407 = vshrl.u32 %v2067, 16
        %v2409 = vrot.slane %v2407, 2
        %v2410 = vshll.u32 %v2067, 16
        %v2412 = vrot.slane %v2410, 3
        %v2413 = vor.u32 %v2409, %v2412
        %v2414 = vsel %vm2343, %v2404, %v2413
        %v2416 = vshrl.u32 %v2068, 16
        %v2418 = vrot.slane %v2416, 2
        %v2419 = vshll.u32 %v2068, 16
        %v2421 = vrot.slane %v2419, 3
        %v2422 = vor.u32 %v2418, %v2421
        %v2423 = vsel %vm2343, %v2413, %v2422
        %v2425 = vshrl.u32 %v2342, 16
        %v2427 = vrot.slane %v2425, 2
        %v2428 = vshll.u32 %v2342, 16
        %v2430 = vrot.slane %v2428, 3
        %v2431 = vor.u32 %v2427, %v2430
        %v2432 = vsel %vm2343, %v2422, %v2431
        %v2458 = vunpack.c.l.b16 %v2324
        %v2459 = vunpack.c.h.b16 %v2324
        %v2460 = vunpack.c.l.b16 %v2325
        %v2461 = vunpack.c.h.b16 %v2325
        %v2462 = vunpack.c.l.b16 %v2326
        %v2463 = vunpack.c.h.b16 %v2326
        %v2464 = vunpack.c.l.b16 %v2327
        %v2465 = vunpack.c.h.b16 %v2327
        %v2466 = vunpack.c.l.b16 %v2328
        %v2467 = vunpack.c.h.b16 %v2328
        %v2468 = vunpack.c.l.b16 %v2329
        %v2469 = vunpack.c.h.b16 %v2329
        %v2470 = vunpack.c.l.b16 %v2330
        %v2471 = vunpack.c.h.b16 %v2330
        %v2472 = vunpack.c.l.b16 %v2331
        %v2473 = vunpack.c.h.b16 %v2331
        %v2474 = vunpack.c.l.b16 %v2332
        %v2475 = vunpack.c.h.b16 %v2332
        %v2476 = vunpack.c.l.b16 %v2333
        %v2477 = vunpack.c.h.b16 %v2333
        %v2478 = vunpack.c.l.b16 %v2334
        %v2479 = vunpack.c.h.b16 %v2334
        %v2480 = vunpack.c.l.b16 %v2335
        %v2481 = vunpack.c.h.b16 %v2335
        %v2482 = vunpack.c.l.b16 %v2336
        %v2483 = vunpack.c.h.b16 %v2336
        %v2484 = vunpack.c.l.b16 %v2337
        %v2485 = vunpack.c.h.b16 %v2337
        %v2486 = vunpack.c.l.b16 %v2338
        %v2487 = vunpack.c.h.b16 %v2338
        %v2488 = vunpack.c.l.b16 %v2339
        %v2489 = vunpack.c.h.b16 %v2339
        %v2490 = vpack.c.b16 %v2460, %v2458
        %v2491 = vpack.c.b16 %v2461, %v2459
        %v2492 = vpack.c.b16 %v2464, %v2462
        %v2493 = vpack.c.b16 %v2465, %v2463
        %v2494 = vpack.c.b16 %v2468, %v2466
        %v2495 = vpack.c.b16 %v2469, %v2467
        %v2496 = vpack.c.b16 %v2472, %v2470
        %v2497 = vpack.c.b16 %v2473, %v2471
        %v2498 = vpack.c.b16 %v2476, %v2474
        %v2499 = vpack.c.b16 %v2477, %v2475
        %v2500 = vpack.c.b16 %v2480, %v2478
        %v2501 = vpack.c.b16 %v2481, %v2479
        %v2502 = vpack.c.b16 %v2484, %v2482
        %v2503 = vpack.c.b16 %v2485, %v2483
        %v2504 = vpack.c.b16 %v2488, %v2486
        %v2505 = vpack.c.b16 %v2489, %v2487
        %2522 = vmatpush.bf16.msra.mxu0 %v2504
        %2523 = vmatpush.bf16.msra.mxu0 %v2502
        %2524 = vmatpush.bf16.msra.mxu0 %v2500
        %2525 = vmatpush.bf16.msra.mxu0 %v2498
        %2526 = vmatpush.bf16.msra.mxu0 %v2496
        %2527 = vmatpush.bf16.msra.mxu0 %v2494
        %2528 = vmatpush.bf16.msra.mxu0 %v2492
        %2529 = vmatpush.bf16.msra.mxu0 %v2490
        %2530 = vmatmul.bf16.gmra.mxu0 %v2360
        %v2531 = vpop.f32.mrf.mxu0
        %v2532 = vadd.f32 0.0, %v2531
        %v2533 = vpop.f32.mrf.mxu0
        %v2534 = vadd.f32 0.0, %v2533
        %2535 = vmatmul.bf16.gmra.mxu0 %v2369
        %v2536 = vpop.f32.mrf.mxu0
        %v2537 = vadd.f32 0.0, %v2536
        %v2538 = vpop.f32.mrf.mxu0
        %v2539 = vadd.f32 0.0, %v2538
        %2540 = vmatmul.bf16.gmra.mxu0 %v2378
        %v2541 = vpop.f32.mrf.mxu0
        %v2542 = vadd.f32 0.0, %v2541
        %v2543 = vpop.f32.mrf.mxu0
        %v2544 = vadd.f32 0.0, %v2543
        %2545 = vmatmul.bf16.gmra.mxu0 %v2387
        %v2546 = vpop.f32.mrf.mxu0
        %v2547 = vadd.f32 0.0, %v2546
        %v2548 = vpop.f32.mrf.mxu0
        %v2549 = vadd.f32 0.0, %v2548
        %2550 = vmatmul.bf16.gmra.mxu0 %v2396
        %v2551 = vpop.f32.mrf.mxu0
        %v2552 = vadd.f32 0.0, %v2551
        %v2553 = vpop.f32.mrf.mxu0
        %v2554 = vadd.f32 0.0, %v2553
        %2555 = vmatmul.bf16.gmra.mxu0 %v2405
        %v2556 = vpop.f32.mrf.mxu0
        %v2557 = vadd.f32 0.0, %v2556
        %v2558 = vpop.f32.mrf.mxu0
        %v2559 = vadd.f32 0.0, %v2558
        %2560 = vmatmul.bf16.gmra.mxu0 %v2414
        %v2561 = vpop.f32.mrf.mxu0
        %v2562 = vadd.f32 0.0, %v2561
        %v2563 = vpop.f32.mrf.mxu0
        %v2564 = vadd.f32 0.0, %v2563
        %2565 = vmatmul.bf16.gmra.mxu0 %v2423
        %v2566 = vpop.f32.mrf.mxu0
        %v2567 = vadd.f32 0.0, %v2566
        %v2568 = vpop.f32.mrf.mxu0
        %v2569 = vadd.f32 0.0, %v2568
        %2570 = vmatmul.bf16.gmra.mxu0 %v2432
        %v2571 = vpop.f32.mrf.mxu0
        %v2572 = vadd.f32 0.0, %v2571
        %v2573 = vpop.f32.mrf.mxu0
        %v2574 = vadd.f32 0.0, %v2573
        %2575 = vdwg.mxu0
        %2576 = vmatpush.bf16.msra.mxu0 %v2505
        %2577 = vmatpush.bf16.msra.mxu0 %v2503
        %2578 = vmatpush.bf16.msra.mxu0 %v2501
        %2579 = vmatpush.bf16.msra.mxu0 %v2499
        %2580 = vmatpush.bf16.msra.mxu0 %v2497
        %2581 = vmatpush.bf16.msra.mxu0 %v2495
        %2582 = vmatpush.bf16.msra.mxu0 %v2493
        %2583 = vmatpush.bf16.msra.mxu0 %v2491
        %2584 = vmatmul.bf16.gmra.mxu0 %v2360
        %v2585 = vpop.f32.mrf.mxu0
        %v2586 = vadd.f32 0.0, %v2585
        %v2587 = vpop.f32.mrf.mxu0
        %v2588 = vadd.f32 0.0, %v2587
        %2589 = vmatmul.bf16.gmra.mxu0 %v2369
        %v2590 = vpop.f32.mrf.mxu0
        %v2591 = vadd.f32 0.0, %v2590
        %v2592 = vpop.f32.mrf.mxu0
        %v2593 = vadd.f32 0.0, %v2592
        %2594 = vmatmul.bf16.gmra.mxu0 %v2378
        %v2595 = vpop.f32.mrf.mxu0
        %v2596 = vadd.f32 0.0, %v2595
        %v2597 = vpop.f32.mrf.mxu0
        %v2598 = vadd.f32 0.0, %v2597
        %2599 = vmatmul.bf16.gmra.mxu0 %v2387
        %v2600 = vpop.f32.mrf.mxu0
        %v2601 = vadd.f32 0.0, %v2600
        %v2602 = vpop.f32.mrf.mxu0
        %v2603 = vadd.f32 0.0, %v2602
        %2604 = vmatmul.bf16.gmra.mxu0 %v2396
        %v2605 = vpop.f32.mrf.mxu0
        %v2606 = vadd.f32 0.0, %v2605
        %v2607 = vpop.f32.mrf.mxu0
        %v2608 = vadd.f32 0.0, %v2607
        %2609 = vmatmul.bf16.gmra.mxu0 %v2405
        %v2610 = vpop.f32.mrf.mxu0
        %v2611 = vadd.f32 0.0, %v2610
        %v2612 = vpop.f32.mrf.mxu0
        %v2613 = vadd.f32 0.0, %v2612
        %2614 = vmatmul.bf16.gmra.mxu0 %v2414
        %v2615 = vpop.f32.mrf.mxu0
        %v2616 = vadd.f32 0.0, %v2615
        %v2617 = vpop.f32.mrf.mxu0
        %v2618 = vadd.f32 0.0, %v2617
        %2619 = vmatmul.bf16.gmra.mxu0 %v2423
        %v2620 = vpop.f32.mrf.mxu0
        %v2621 = vadd.f32 0.0, %v2620
        %v2622 = vpop.f32.mrf.mxu0
        %v2623 = vadd.f32 0.0, %v2622
        %2624 = vmatmul.bf16.gmra.mxu0 %v2432
        %v2625 = vpop.f32.mrf.mxu0
        %v2626 = vadd.f32 0.0, %v2625
        %v2627 = vpop.f32.mrf.mxu0
        %v2628 = vadd.f32 0.0, %v2627
        %2629 = vdwg.mxu0
        %v2630 = vadd.f32 %v2286, %v2532
        %v2631 = vadd.f32 %v2287, %v2586
        %v2632 = vadd.f32 %v2288, %v2534
        %v2633 = vadd.f32 %v2289, %v2588
        %v2634 = vadd.f32 %v2290, %v2537
        %v2635 = vadd.f32 %v2291, %v2591
        %v2636 = vadd.f32 %v2292, %v2539
        %v2637 = vadd.f32 %v2293, %v2593
        %v2638 = vadd.f32 %v2294, %v2542
        %v2639 = vadd.f32 %v2295, %v2596
        %v2640 = vadd.f32 %v2296, %v2544
        %v2641 = vadd.f32 %v2297, %v2598
        %v2642 = vadd.f32 %v2298, %v2547
        %v2643 = vadd.f32 %v2299, %v2601
        %v2644 = vadd.f32 %v2300, %v2549
        %v2645 = vadd.f32 %v2301, %v2603
        %v2646 = vadd.f32 %v2302, %v2552
        %v2647 = vadd.f32 %v2303, %v2606
        %v2648 = vadd.f32 %v2304, %v2554
        %v2649 = vadd.f32 %v2305, %v2608
        %v2650 = vadd.f32 %v2306, %v2557
        %v2651 = vadd.f32 %v2307, %v2611
        %v2652 = vadd.f32 %v2308, %v2559
        %v2653 = vadd.f32 %v2309, %v2613
        %v2654 = vadd.f32 %v2310, %v2562
        %v2655 = vadd.f32 %v2311, %v2616
        %v2656 = vadd.f32 %v2312, %v2564
        %v2657 = vadd.f32 %v2313, %v2618
        %v2658 = vadd.f32 %v2314, %v2567
        %v2659 = vadd.f32 %v2315, %v2621
        %v2660 = vadd.f32 %v2316, %v2569
        %v2661 = vadd.f32 %v2317, %v2623
        %v2662 = vadd.f32 %v2318, %v2572
        %v2663 = vadd.f32 %v2319, %v2626
        %v2664 = vadd.f32 %v2320, %v2574
        %v2665 = vadd.f32 %v2321, %v2628
        %v2666 = vld [vmem:[%s186 + $0x10] sm:$0x8]
        %s2667 = scalar_lea.vmem [#allocation2], 1024
        %v2668 = vld [vmem:[%s2667] sm:$0xff]
        %v2669 = vld [vmem:[%s2667 + $0x8] sm:$0xff]
        %v2670 = vld [vmem:[%s2667 + $0x10] sm:$0xff]
        %v2671 = vld [vmem:[%s2667 + $0x18] sm:$0xff]
        %v2672 = vld [vmem:[%s2667 + $0x20] sm:$0xff]
        %v2673 = vld [vmem:[%s2667 + $0x28] sm:$0xff]
        %v2674 = vld [vmem:[%s2667 + $0x30] sm:$0xff]
        %v2675 = vld [vmem:[%s2667 + $0x38] sm:$0xff]
        %v2676 = vld [vmem:[%s2667 + $0x40] sm:$0xff]
        %v2677 = vld [vmem:[%s2667 + $0x48] sm:$0xff]
        %v2678 = vld [vmem:[%s2667 + $0x50] sm:$0xff]
        %v2679 = vld [vmem:[%s2667 + $0x58] sm:$0xff]
        %v2680 = vld [vmem:[%s2667 + $0x60] sm:$0xff]
        %v2681 = vld [vmem:[%s2667 + $0x68] sm:$0xff]
        %v2682 = vld [vmem:[%s2667 + $0x70] sm:$0xff]
        %v2683 = vld [vmem:[%s2667 + $0x78] sm:$0xff]
        %v2685 = vunpack.c.l.b16 %v2666
        %v2686 = vpack.c.b16 %v2042, %v2685
        %vm2687 = vcmask 1044480
        %v2688 = vrot.slane %v2686, 3
        %v2689 = vrot.slane %v2061, 3
        %v2690 = vsel %vm2687, %v2688, %v2689
        %v2691 = vrot.slane %v2062, 3
        %v2692 = vsel %vm2687, %v2689, %v2691
        %v2693 = vrot.slane %v2063, 3
        %v2694 = vsel %vm2687, %v2691, %v2693
        %v2695 = vrot.slane %v2064, 3
        %v2696 = vsel %vm2687, %v2693, %v2695
        %v2697 = vrot.slane %v2065, 3
        %v2698 = vsel %vm2687, %v2695, %v2697
        %v2699 = vrot.slane %v2066, 3
        %v2700 = vsel %vm2687, %v2697, %v2699
        %v2701 = vrot.slane %v2067, 3
        %v2702 = vsel %vm2687, %v2699, %v2701
        %v2703 = vrot.slane %v2068, 3
        %v2704 = vsel %vm2687, %v2701, %v2703
        %v2705 = vrot.slane %v2342, 3
        %v2706 = vsel %vm2687, %v2703, %v2705
        %v2732 = vunpack.c.l.b16 %v2668
        %v2733 = vunpack.c.h.b16 %v2668
        %v2734 = vunpack.c.l.b16 %v2669
        %v2735 = vunpack.c.h.b16 %v2669
        %v2736 = vunpack.c.l.b16 %v2670
        %v2737 = vunpack.c.h.b16 %v2670
        %v2738 = vunpack.c.l.b16 %v2671
        %v2739 = vunpack.c.h.b16 %v2671
        %v2740 = vunpack.c.l.b16 %v2672
        %v2741 = vunpack.c.h.b16 %v2672
        %v2742 = vunpack.c.l.b16 %v2673
        %v2743 = vunpack.c.h.b16 %v2673
        %v2744 = vunpack.c.l.b16 %v2674
        %v2745 = vunpack.c.h.b16 %v2674
        %v2746 = vunpack.c.l.b16 %v2675
        %v2747 = vunpack.c.h.b16 %v2675
        %v2748 = vunpack.c.l.b16 %v2676
        %v2749 = vunpack.c.h.b16 %v2676
        %v2750 = vunpack.c.l.b16 %v2677
        %v2751 = vunpack.c.h.b16 %v2677
        %v2752 = vunpack.c.l.b16 %v2678
        %v2753 = vunpack.c.h.b16 %v2678
        %v2754 = vunpack.c.l.b16 %v2679
        %v2755 = vunpack.c.h.b16 %v2679
        %v2756 = vunpack.c.l.b16 %v2680
        %v2757 = vunpack.c.h.b16 %v2680
        %v2758 = vunpack.c.l.b16 %v2681
        %v2759 = vunpack.c.h.b16 %v2681
        %v2760 = vunpack.c.l.b16 %v2682
        %v2761 = vunpack.c.h.b16 %v2682
        %v2762 = vunpack.c.l.b16 %v2683
        %v2763 = vunpack.c.h.b16 %v2683
        %v2764 = vpack.c.b16 %v2734, %v2732
        %v2765 = vpack.c.b16 %v2735, %v2733
        %v2766 = vpack.c.b16 %v2738, %v2736
        %v2767 = vpack.c.b16 %v2739, %v2737
        %v2768 = vpack.c.b16 %v2742, %v2740
        %v2769 = vpack.c.b16 %v2743, %v2741
        %v2770 = vpack.c.b16 %v2746, %v2744
        %v2771 = vpack.c.b16 %v2747, %v2745
        %v2772 = vpack.c.b16 %v2750, %v2748
        %v2773 = vpack.c.b16 %v2751, %v2749
        %v2774 = vpack.c.b16 %v2754, %v2752
        %v2775 = vpack.c.b16 %v2755, %v2753
        %v2776 = vpack.c.b16 %v2758, %v2756
        %v2777 = vpack.c.b16 %v2759, %v2757
        %v2778 = vpack.c.b16 %v2762, %v2760
        %v2779 = vpack.c.b16 %v2763, %v2761
        %2796 = vmatpush.bf16.msra.mxu0 %v2778
        %2797 = vmatpush.bf16.msra.mxu0 %v2776
        %2798 = vmatpush.bf16.msra.mxu0 %v2774
        %2799 = vmatpush.bf16.msra.mxu0 %v2772
        %2800 = vmatpush.bf16.msra.mxu0 %v2770
        %2801 = vmatpush.bf16.msra.mxu0 %v2768
        %2802 = vmatpush.bf16.msra.mxu0 %v2766
        %2803 = vmatpush.bf16.msra.mxu0 %v2764
        %2804 = vmatmul.bf16.gmra.mxu0 %v2690
        %v2805 = vpop.f32.mrf.mxu0
        %v2806 = vadd.f32 0.0, %v2805
        %v2807 = vpop.f32.mrf.mxu0
        %v2808 = vadd.f32 0.0, %v2807
        %2809 = vmatmul.bf16.gmra.mxu0 %v2692
        %v2810 = vpop.f32.mrf.mxu0
        %v2811 = vadd.f32 0.0, %v2810
        %v2812 = vpop.f32.mrf.mxu0
        %v2813 = vadd.f32 0.0, %v2812
        %2814 = vmatmul.bf16.gmra.mxu0 %v2694
        %v2815 = vpop.f32.mrf.mxu0
        %v2816 = vadd.f32 0.0, %v2815
        %v2817 = vpop.f32.mrf.mxu0
        %v2818 = vadd.f32 0.0, %v2817
        %2819 = vmatmul.bf16.gmra.mxu0 %v2696
        %v2820 = vpop.f32.mrf.mxu0
        %v2821 = vadd.f32 0.0, %v2820
        %v2822 = vpop.f32.mrf.mxu0
        %v2823 = vadd.f32 0.0, %v2822
        %2824 = vmatmul.bf16.gmra.mxu0 %v2698
        %v2825 = vpop.f32.mrf.mxu0
        %v2826 = vadd.f32 0.0, %v2825
        %v2827 = vpop.f32.mrf.mxu0
        %v2828 = vadd.f32 0.0, %v2827
        %2829 = vmatmul.bf16.gmra.mxu0 %v2700
        %v2830 = vpop.f32.mrf.mxu0
        %v2831 = vadd.f32 0.0, %v2830
        %v2832 = vpop.f32.mrf.mxu0
        %v2833 = vadd.f32 0.0, %v2832
        %2834 = vmatmul.bf16.gmra.mxu0 %v2702
        %v2835 = vpop.f32.mrf.mxu0
        %v2836 = vadd.f32 0.0, %v2835
        %v2837 = vpop.f32.mrf.mxu0
        %v2838 = vadd.f32 0.0, %v2837
        %2839 = vmatmul.bf16.gmra.mxu0 %v2704
        %v2840 = vpop.f32.mrf.mxu0
        %v2841 = vadd.f32 0.0, %v2840
        %v2842 = vpop.f32.mrf.mxu0
        %v2843 = vadd.f32 0.0, %v2842
        %2844 = vmatmul.bf16.gmra.mxu0 %v2706
        %v2845 = vpop.f32.mrf.mxu0
        %v2846 = vadd.f32 0.0, %v2845
        %v2847 = vpop.f32.mrf.mxu0
        %v2848 = vadd.f32 0.0, %v2847
        %2849 = vdwg.mxu0
        %2850 = vmatpush.bf16.msra.mxu0 %v2779
        %2851 = vmatpush.bf16.msra.mxu0 %v2777
        %2852 = vmatpush.bf16.msra.mxu0 %v2775
        %2853 = vmatpush.bf16.msra.mxu0 %v2773
        %2854 = vmatpush.bf16.msra.mxu0 %v2771
        %2855 = vmatpush.bf16.msra.mxu0 %v2769
        %2856 = vmatpush.bf16.msra.mxu0 %v2767
        %2857 = vmatpush.bf16.msra.mxu0 %v2765
        %2858 = vmatmul.bf16.gmra.mxu0 %v2690
        %v2859 = vpop.f32.mrf.mxu0
        %v2860 = vadd.f32 0.0, %v2859
        %v2861 = vpop.f32.mrf.mxu0
        %v2862 = vadd.f32 0.0, %v2861
        %2863 = vmatmul.bf16.gmra.mxu0 %v2692
        %v2864 = vpop.f32.mrf.mxu0
        %v2865 = vadd.f32 0.0, %v2864
        %v2866 = vpop.f32.mrf.mxu0
        %v2867 = vadd.f32 0.0, %v2866
        %2868 = vmatmul.bf16.gmra.mxu0 %v2694
        %v2869 = vpop.f32.mrf.mxu0
        %v2870 = vadd.f32 0.0, %v2869
        %v2871 = vpop.f32.mrf.mxu0
        %v2872 = vadd.f32 0.0, %v2871
        %2873 = vmatmul.bf16.gmra.mxu0 %v2696
        %v2874 = vpop.f32.mrf.mxu0
        %v2875 = vadd.f32 0.0, %v2874
        %v2876 = vpop.f32.mrf.mxu0
        %v2877 = vadd.f32 0.0, %v2876
        %2878 = vmatmul.bf16.gmra.mxu0 %v2698
        %v2879 = vpop.f32.mrf.mxu0
        %v2880 = vadd.f32 0.0, %v2879
        %v2881 = vpop.f32.mrf.mxu0
        %v2882 = vadd.f32 0.0, %v2881
        %2883 = vmatmul.bf16.gmra.mxu0 %v2700
        %v2884 = vpop.f32.mrf.mxu0
        %v2885 = vadd.f32 0.0, %v2884
        %v2886 = vpop.f32.mrf.mxu0
        %v2887 = vadd.f32 0.0, %v2886
        %2888 = vmatmul.bf16.gmra.mxu0 %v2702
        %v2889 = vpop.f32.mrf.mxu0
        %v2890 = vadd.f32 0.0, %v2889
        %v2891 = vpop.f32.mrf.mxu0
        %v2892 = vadd.f32 0.0, %v2891
        %2893 = vmatmul.bf16.gmra.mxu0 %v2704
        %v2894 = vpop.f32.mrf.mxu0
        %v2895 = vadd.f32 0.0, %v2894
        %v2896 = vpop.f32.mrf.mxu0
        %v2897 = vadd.f32 0.0, %v2896
        %2898 = vmatmul.bf16.gmra.mxu0 %v2706
        %v2899 = vpop.f32.mrf.mxu0
        %v2900 = vadd.f32 0.0, %v2899
        %v2901 = vpop.f32.mrf.mxu0
        %v2902 = vadd.f32 0.0, %v2901
        %2903 = vdwg.mxu0
        %v2904 = vadd.f32 %v2630, %v2806
        %v2905 = vadd.f32 %v2631, %v2860
        %v2906 = vadd.f32 %v2632, %v2808
        %v2907 = vadd.f32 %v2633, %v2862
        %v2908 = vadd.f32 %v2634, %v2811
        %v2909 = vadd.f32 %v2635, %v2865
        %v2910 = vadd.f32 %v2636, %v2813
        %v2911 = vadd.f32 %v2637, %v2867
        %v2912 = vadd.f32 %v2638, %v2816
        %v2913 = vadd.f32 %v2639, %v2870
        %v2914 = vadd.f32 %v2640, %v2818
        %v2915 = vadd.f32 %v2641, %v2872
        %v2916 = vadd.f32 %v2642, %v2821
        %v2917 = vadd.f32 %v2643, %v2875
        %v2918 = vadd.f32 %v2644, %v2823
        %v2919 = vadd.f32 %v2645, %v2877
        %v2920 = vadd.f32 %v2646, %v2826
        %v2921 = vadd.f32 %v2647, %v2880
        %v2922 = vadd.f32 %v2648, %v2828
        %v2923 = vadd.f32 %v2649, %v2882
        %v2924 = vadd.f32 %v2650, %v2831
        %v2925 = vadd.f32 %v2651, %v2885
        %v2926 = vadd.f32 %v2652, %v2833
        %v2927 = vadd.f32 %v2653, %v2887
        %v2928 = vadd.f32 %v2654, %v2836
        %v2929 = vadd.f32 %v2655, %v2890
        %v2930 = vadd.f32 %v2656, %v2838
        %v2931 = vadd.f32 %v2657, %v2892
        %v2932 = vadd.f32 %v2658, %v2841
        %v2933 = vadd.f32 %v2659, %v2895
        %v2934 = vadd.f32 %v2660, %v2843
        %v2935 = vadd.f32 %v2661, %v2897
        %v2936 = vadd.f32 %v2662, %v2846
        %v2937 = vadd.f32 %v2663, %v2900
        %v2938 = vadd.f32 %v2664, %v2848
        %v2939 = vadd.f32 %v2665, %v2902
        %v2940 = vsub.f32 0.0, %v2905
        %v2941 = vsub.f32 0.0, %v2907
        %v2942 = vsub.f32 0.0, %v2909
        %v2943 = vsub.f32 0.0, %v2911
        %v2944 = vsub.f32 0.0, %v2913
        %v2945 = vsub.f32 0.0, %v2915
        %v2946 = vsub.f32 0.0, %v2917
        %v2947 = vsub.f32 0.0, %v2919
        %v2948 = vsub.f32 0.0, %v2921
        %v2949 = vsub.f32 0.0, %v2923
        %v2950 = vsub.f32 0.0, %v2925
        %v2951 = vsub.f32 0.0, %v2927
        %v2952 = vsub.f32 0.0, %v2929
        %v2953 = vsub.f32 0.0, %v2931
        %v2954 = vsub.f32 0.0, %v2933
        %v2955 = vsub.f32 0.0, %v2935
        %v2956 = vsub.f32 0.0, %v2937
        %v2957 = vsub.f32 0.0, %v2939
        %v2958 = vmul.f32 %v2940, 1.442695
        %v2959 = vpow.pop %v2958
        %v2960 = vmul.f32 %v2941, 1.442695
        %v2961 = vpow.pop %v2960
        %v2962 = vmul.f32 %v2942, 1.442695
        %v2963 = vpow.pop %v2962
        %v2964 = vmul.f32 %v2943, 1.442695
        %v2965 = vpow.pop %v2964
        %v2966 = vmul.f32 %v2944, 1.442695
        %v2967 = vpow.pop %v2966
        %v2968 = vmul.f32 %v2945, 1.442695
        %v2969 = vpow.pop %v2968
        %v2970 = vmul.f32 %v2946, 1.442695
        %v2971 = vpow.pop %v2970
        %v2972 = vmul.f32 %v2947, 1.442695
        %v2973 = vpow.pop %v2972
        %v2974 = vmul.f32 %v2948, 1.442695
        %v2975 = vpow.pop %v2974
        %v2976 = vmul.f32 %v2949, 1.442695
        %v2977 = vpow.pop %v2976
        %v2978 = vmul.f32 %v2950, 1.442695
        %v2979 = vpow.pop %v2978
        %v2980 = vmul.f32 %v2951, 1.442695
        %v2981 = vpow.pop %v2980
        %v2982 = vmul.f32 %v2952, 1.442695
        %v2983 = vpow.pop %v2982
        %v2984 = vmul.f32 %v2953, 1.442695
        %v2985 = vpow.pop %v2984
        %v2986 = vmul.f32 %v2954, 1.442695
        %v2987 = vpow.pop %v2986
        %v2988 = vmul.f32 %v2955, 1.442695
        %v2989 = vpow.pop %v2988
        %v2990 = vmul.f32 %v2956, 1.442695
        %v2991 = vpow.pop %v2990
        %v2992 = vmul.f32 %v2957, 1.442695
        %v2993 = vpow.pop %v2992
        %v2994 = vadd.f32 %v2959, 1.0
        %v2995 = vadd.f32 %v2961, 1.0
        %v2996 = vadd.f32 %v2963, 1.0
        %v2997 = vadd.f32 %v2965, 1.0
        %v2998 = vadd.f32 %v2967, 1.0
        %v2999 = vadd.f32 %v2969, 1.0
        %v3000 = vadd.f32 %v2971, 1.0
        %v3001 = vadd.f32 %v2973, 1.0
        %v3002 = vadd.f32 %v2975, 1.0
        %v3003 = vadd.f32 %v2977, 1.0
        %v3004 = vadd.f32 %v2979, 1.0
        %v3005 = vadd.f32 %v2981, 1.0
        %v3006 = vadd.f32 %v2983, 1.0
        %v3007 = vadd.f32 %v2985, 1.0
        %v3008 = vadd.f32 %v2987, 1.0
        %v3009 = vadd.f32 %v2989, 1.0
        %v3010 = vadd.f32 %v2991, 1.0
        %v3011 = vadd.f32 %v2993, 1.0
        %v3012 = vrcp.pop %v2994
        %v3013 = vrcp.pop %v2995
        %v3014 = vrcp.pop %v2996
        %v3015 = vrcp.pop %v2997
        %v3016 = vrcp.pop %v2998
        %v3017 = vrcp.pop %v2999
        %v3018 = vrcp.pop %v3000
        %v3019 = vrcp.pop %v3001
        %v3020 = vrcp.pop %v3002
        %v3021 = vrcp.pop %v3003
        %v3022 = vrcp.pop %v3004
        %v3023 = vrcp.pop %v3005
        %v3024 = vrcp.pop %v3006
        %v3025 = vrcp.pop %v3007
        %v3026 = vrcp.pop %v3008
        %v3027 = vrcp.pop %v3009
        %v3028 = vrcp.pop %v3010
        %v3029 = vrcp.pop %v3011
        %v3030 = vmul.f32 %v2904, %v3012
        %v3031 = vmul.f32 %v2906, %v3013
        %v3032 = vmul.f32 %v2908, %v3014
        %v3033 = vmul.f32 %v2910, %v3015
        %v3034 = vmul.f32 %v2912, %v3016
        %v3035 = vmul.f32 %v2914, %v3017
        %v3036 = vmul.f32 %v2916, %v3018
        %v3037 = vmul.f32 %v2918, %v3019
        %v3038 = vmul.f32 %v2920, %v3020
        %v3039 = vmul.f32 %v2922, %v3021
        %v3040 = vmul.f32 %v2924, %v3022
        %v3041 = vmul.f32 %v2926, %v3023
        %v3042 = vmul.f32 %v2928, %v3024
        %v3043 = vmul.f32 %v2930, %v3025
        %v3044 = vmul.f32 %v2932, %v3026
        %v3045 = vmul.f32 %v2934, %v3027
        %v3046 = vmul.f32 %v2936, %v3028
        %v3047 = vmul.f32 %v2938, %v3029
        %3048 = vst [vmem:[%s177] sm:$0xff] %v3030
        %3049 = vst [vmem:[%s177 + $0x8] sm:$0xff] %v3031
        %3050 = vst [vmem:[%s177 + $0x10] sm:$0xff] %v3032
        %3051 = vst [vmem:[%s177 + $0x18] sm:$0xff] %v3033
        %3052 = vst [vmem:[%s177 + $0x20] sm:$0xff] %v3034
        %3053 = vst [vmem:[%s177 + $0x28] sm:$0xff] %v3035
        %3054 = vst [vmem:[%s177 + $0x30] sm:$0xff] %v3036
        %3055 = vst [vmem:[%s177 + $0x38] sm:$0xff] %v3037
        %3056 = vst [vmem:[%s177 + $0x40] sm:$0xff] %v3038
        %3057 = vst [vmem:[%s177 + $0x48] sm:$0xff] %v3039
        %3058 = vst [vmem:[%s177 + $0x50] sm:$0xff] %v3040
        %3059 = vst [vmem:[%s177 + $0x58] sm:$0xff] %v3041
        %3060 = vst [vmem:[%s177 + $0x60] sm:$0xff] %v3042
        %3061 = vst [vmem:[%s177 + $0x68] sm:$0xff] %v3043
        %3062 = vst [vmem:[%s177 + $0x70] sm:$0xff] %v3044
        %3063 = vst [vmem:[%s177 + $0x78] sm:$0xff] %v3045
        %3064 = vst [vmem:[%s177 + $0x80] sm:$0xff] %v3046
        %3065 = vst [vmem:[%s177 + $0x88] sm:$0xff] %v3047
        %s3066 = sand.u32 %s88, 1
        %s3067 = scalar_lea.sflag [#allocation4], %s3066
        %s3068 = sand.u32 %s88, 1
        %s3069 = smul.addr %s3068, 144
        %s3070 = scalar_lea.vmem [#allocation5], %s3069
        // Predicated region
        $region33: #{tpu_custom_call.1} parent=27 // pred_check
          %p3071 = pneg %p98
        $region34: #{tpu_custom_call.1} parent=27 // pred_check_branch
          %3073 = sbr.rel (%p3071) target = $region36
        $region35: #{tpu_custom_call.1} parent=27 // pred_region
          %3075 = vsyncadd %s3067, 0
          %s3076 = smul.addr %s22, 18
          %s3077 = smul.addr %s21, 36
          %s3078 = sadd.s32 %s3076, %s3077
          %s3079 = smul.addr %s3078, 8
          %s3080 = scalar_lea.hbm %s2, %s3079
          %s3081 = sshll.u32 %s3070, 4
          %s3082 = int_to_ptr.vmem [resolvable:$true] %s3081
          %s3083 = sshll.u32 %s3080, 4
          %s3084 = int_to_ptr.hbm [resolvable:$true] %s3083
          %3089 = dma.vmem_to_hbm [thread:$0]  %s3082, 2304, %s3084, %s3067, 128, 128, 8
        $region36: #{tpu_custom_call.1} parent=27 // pred_fallthru
          _
      $region28: #{tpu_custom_call.1} parent=5 // pred_fallthru
        _
      %p3090 = scmp.le.s32.totalorder 2, %s12
      // Predicated region
      $region37: #{tpu_custom_call.1} parent=5 // pred_check
        %p3091 = pneg %p3090
      $region38: #{tpu_custom_call.1} parent=5 // pred_check_branch
        %3093 = sbr.rel (%p3091) target = $region40
      $region39: #{tpu_custom_call.1} parent=5 // pred_region
        %s3094 = ssub.s32 %s12, 2
        // Predicated region
        $region41: #{tpu_custom_call.1} parent=39 // pred_check
          %p3095 = pneg %p104
        $region42: #{tpu_custom_call.1} parent=39 // pred_check_branch
          %3097 = sbr.rel (%p3095) target = $region44
        $region43: #{tpu_custom_call.1} parent=39 // pred_region
          %s3098 = sand.u32 %s89, 1
          %s3099 = scalar_lea.sflag [#allocation4], %s3098
          %s3100 = sand.u32 %s89, 1
          %s3101 = smul.addr %s3100, 144
          %s3102 = scalar_lea.vmem [#allocation5], %s3101
          %3104 = dma.done %s3099, 2304
        $region44: #{tpu_custom_call.1} parent=39 // pred_fallthru
          _
      $region40: #{tpu_custom_call.1} parent=5 // pred_fallthru
        _
    $region6: #{tpu_custom_call.1} parent=1 // loop_footer
      %s16 = sadd.s32 1, %s12
    $region7: #{tpu_custom_call.1} parent=1 // loop_footer_branch
      %11 = sbr.rel target = $region3
    $region8: #{tpu_custom_call.1} parent=1 // loop_exit
      _
    %3105 = vsyncpa [#allocation3], 1
    %s3106 = scalar_lea.sflag [#allocation3], 1
    %3107 = vsyncpa %s3106, 1
    %3108 = vsyncpa [#allocation4], 1
    %s3109 = scalar_lea.sflag [#allocation4], 1
    %3110 = vsyncpa %s3109, 1

</llo_original>
